<compile_context>
chip_gen: v7x
topology: tpu7x:2x2x1
jax: 0.10.0
libtpu: 0.0.40
codegen_flags: <defaults>
</compile_context>

<pallas_src>
import jax
import jax.numpy as jnp
from jax import lax
from jax.experimental import pallas as pl
from jax.experimental.pallas import tpu as pltpu


# ---------------------------------------------------------------------------
# Fused kernel: denoiser (conv+ReLU, conv+residual) + classifier (conv+ReLU,
# global-avg-pool folded into FC).  All intermediates live in VMEM/vregs.
# ---------------------------------------------------------------------------
def _fused_kernel(x_ref, wb1_ref, b1_ref, wb2_ref, b2_ref, wb3_ref, b3_ref,
                  wpool_ref, bfc_ref, o_ref):
    H = x_ref.shape[1]
    x = x_ref[0]                                            # (H, NB*W*C) f32

    # 0/1 boundary masks for the vertical taps (one iota + two compares, and the
    # grid has a single step here, so this runs once).
    row = lax.broadcasted_iota(jnp.int32, (H, 1), 0)
    mask_top = (row > 0).astype(jnp.float32)                # zeroes row 0
    mask_bot = (row < H - 1).astype(jnp.float32)            # zeroes row H-1

    def conv3x3(a, wb_ref, b_ref, relu):
        # a: (H, L_in) f32; wb_ref: (3, L_in, L_out) block-banded bf16 weights;
        # b_ref: (1, L_out) f32.  Vertical SAME padding = roll + boundary mask
        # (XLU/VPU); horizontal SAME padding + channel mix live inside the
        # banded weight matrices (band truncation at block edges).
        a_dn = pltpu.roll(a, shift=1, axis=0) * mask_top        # a_dn[h] = a[h-1]
        a_up = pltpu.roll(a, shift=H - 1, axis=0) * mask_bot    # ≡ shift -1: a[h+1]
        cdt = wb_ref.dtype                                      # bf16 MXU inputs
        acc = jnp.dot(a_dn.astype(cdt), wb_ref[0],
                      preferred_element_type=jnp.float32)
        acc = acc + jnp.dot(a.astype(cdt), wb_ref[1],
                            preferred_element_type=jnp.float32)
        acc = acc + jnp.dot(a_up.astype(cdt), wb_ref[2],
                            preferred_element_type=jnp.float32)
        acc = acc + b_ref[...]                                  # f32 bias add
        return jnp.maximum(acc, 0.0) if relu else acc

    # ---- denoiser: conv+ReLU, conv, residual (residual kept in f32) ----
    h = conv3x3(x, wb1_ref, b1_ref, relu=True)                  # (H, NB*W*C)
    y = x - conv3x3(h, wb2_ref, b2_ref, relu=False)
    # ---- classifier: conv+ReLU, global-avg-pool folded into the FC ----
    f = conv3x3(y, wb3_ref, b3_ref, relu=True)                  # (H, NB*W*F)
    colsum = jnp.sum(f, axis=0, keepdims=True)                  # (1, NB*W*F)
    logits = jnp.dot(colsum.astype(wpool_ref.dtype), wpool_ref[...],
                     preferred_element_type=jnp.float32) + bfc_ref[...]
    o_ref[...] = logits.reshape(1, 1, -1).astype(o_ref.dtype)   # (1,1,128) lane-dense


# ---------------------------------------------------------------------------
# Load-time weight re-layout (runs once) + jitted forward.
# ---------------------------------------------------------------------------
def _band_weights(w, W, NB):
    # (3,3,Cin,Cout) HWIO -> (3, NB*W*Cin, NB*W*Cout) block-banded matrices,
    # block-diagonal over the NB lane-folded batch elements.  Band truncation at
    # the block edges implements SAME zero-padding along W.
    Cin, Cout = w.shape[2], w.shape[3]
    bands = []
    for kh in range(3):
        m = jnp.zeros((W * Cin, W * Cout), w.dtype)
        for kw in range(3):
            m = m + jnp.kron(jnp.eye(W, W, k=1 - kw, dtype=w.dtype), w[kh, kw])
        bands.append(jnp.kron(jnp.eye(NB, dtype=w.dtype), m))
    return jnp.stack(bands, axis=0)


def make_denoised_model(params, input_shape, *, k_pad=128,
                        mxu_dtype=jnp.bfloat16):
    """Pre-bands/packs weights once (model-load time); returns jitted forward."""
    N, C, H, W = input_shape
    F = params["c_w1"].shape[-1]
    K = params["c_wfc"].shape[-1]
    assert params["d_w2"].shape[-1] == C          # residual needs C channels
    NB = max(1, 128 // (W * C))                   # batch elems folded into lanes
    G = -(-N // NB)                               # grid steps (cdiv)
    assert NB * K <= k_pad
    L_in = NB * W * C

    # Banded conv weights (bf16 MXU inputs), biases tiled to the packed lanes.
    wb1 = _band_weights(params["d_w1"], W, NB).astype(mxu_dtype)   # (3,128,128)
    wb2 = _band_weights(params["d_w2"], W, NB).astype(mxu_dtype)   # (3,128,128)
    wb3 = _band_weights(params["c_w1"], W, NB).astype(mxu_dtype)   # (3,128,256)
    b1 = jnp.tile(params["d_b1"], (1, NB * W)).astype(jnp.float32)
    b2 = jnp.tile(params["d_b2"], (1, NB * W)).astype(jnp.float32)
    b3 = jnp.tile(params["c_b1"], (1, NB * W)).astype(jnp.float32)
    # Global-average-pool folded into the FC; columns zero-padded to 128 lanes.
    wpool_1 = jnp.tile(params["c_wfc"], (W, 1)) / float(H * W)     # (W*F, K)
    wpool = jnp.kron(jnp.eye(NB, dtype=wpool_1.dtype), wpool_1)    # (NB*W*F, NB*K)
    wpool = jnp.pad(wpool, ((0, 0), (0, k_pad - NB * K))).astype(mxu_dtype)
    bfc = jnp.pad(jnp.tile(params["c_bfc"], (1, NB)),
                  ((0, 0), (0, k_pad - NB * K))).astype(jnp.float32)

    fused = pl.pallas_call(
        _fused_kernel,
        out_shape=jax.ShapeDtypeStruct((G, 1, k_pad), jnp.float32),
        grid=(G,),
        in_specs=[
            pl.BlockSpec((1, H, L_in), lambda g: (g, 0, 0)),
            pl.BlockSpec(wb1.shape, lambda g: (0, 0, 0)),
            pl.BlockSpec(b1.shape, lambda g: (0, 0)),
            pl.BlockSpec(wb2.shape, lambda g: (0, 0, 0)),
            pl.BlockSpec(b2.shape, lambda g: (0, 0)),
            pl.BlockSpec(wb3.shape, lambda g: (0, 0, 0)),
            pl.BlockSpec(b3.shape, lambda g: (0, 0)),
            pl.BlockSpec(wpool.shape, lambda g: (0, 0)),
            pl.BlockSpec(bfc.shape, lambda g: (0, 0)),
        ],
        out_specs=pl.BlockSpec((1, 1, k_pad), lambda g: (g, 0, 0)),
        # Single step for this batch size (no serial-grid overhead on v5e/v6e);
        # for larger N the "parallel" axis shards steps across v7x's two TCs.
        compiler_params=pltpu.CompilerParams(
            dimension_semantics=("parallel",)),
    )

    @jax.jit
    def forward(x_nchw):
        # NCHW -> (G, H, NB*W*C): NHWC row-major flatten with NB batch elements
        # folded into the lane dimension (all 128 lanes of every vreg used).
        x = jnp.transpose(x_nchw, (0, 2, 3, 1))                  # (N,H,W,C)
        if G * NB != N:                                          # pad ragged batch
            x = jnp.pad(x, ((0, G * NB - N), (0, 0), (0, 0), (0, 0)))
        x = (x.reshape(G, NB, H, W * C)
              .transpose(0, 2, 1, 3)
              .reshape(G, H, L_in))
        out = fused(x, wb1, b1, wb2, b2, wb3, b3, wpool, bfc)    # (G,1,k_pad)
        logits = out[:, 0, :NB * K].reshape(G * NB, K)
        return logits[:N]                                        # (N, K)

    return forward


# ---------------------------------------------------------------------------
# Pure-JAX reference for validation
# ---------------------------------------------------------------------------
def _conv_ref(x_nhwc, w, b):
    y = lax.conv_general_dilated(
        x_nhwc, w, window_strides=(1, 1), padding="SAME",
        dimension_numbers=("NHWC", "HWIO", "NHWC"))
    return y + b[0][None, None, None, :]


def reference_model(x_nchw, params):
    x = jnp.transpose(x_nchw, (0, 2, 3, 1))
    h = jnp.maximum(_conv_ref(x, params["d_w1"], params["d_b1"]), 0.0)
    y = x - _conv_ref(h, params["d_w2"], params["d_b2"])
    f = jnp.maximum(_conv_ref(y, params["c_w1"], params["c_b1"]), 0.0)
    pooled = jnp.mean(f, axis=(1, 2))
    return pooled @ params["c_wfc"] + params["c_bfc"][0][None, :]


# ---------------------------------------------------------------------------
if __name__ == "__main__":
    # TODO(synk): the real checkpoints (denoiser_path / classifier_path) define
    # the true architectures; synthetic deterministic weights are used instead.
    N, C, H, W = 2, 4, 16, 16      # input
    F, K = 8, 10                   # classifier feature channels / classes

    key = jax.random.PRNGKey(0)
    ks = jax.random.split(key, 9)
    params = {
        "d_w1": 0.1 * jax.random.normal(ks[0], (3, 3, C, C), jnp.float32),
        "d_b1": 0.1 * jax.random.normal(ks[1], (1, C), jnp.float32),
        "d_w2": 0.1 * jax.random.normal(ks[2], (3, 3, C, C), jnp.float32),
        "d_b2": 0.1 * jax.random.normal(ks[3], (1, C), jnp.float32),
        "c_w1": 0.1 * jax.random.normal(ks[4], (3, 3, C, F), jnp.float32),
        "c_b1": 0.1 * jax.random.normal(ks[5], (1, F), jnp.float32),
        "c_wfc": 0.1 * jax.random.normal(ks[6], (F, K), jnp.float32),
        "c_bfc": 0.1 * jax.random.normal(ks[7], (1, K), jnp.float32),
    }
    x = jax.random.normal(ks[8], (N, C, H, W), jnp.float32)

    forward = make_denoised_model(params, (N, C, H, W))   # weight prep runs once
    out = jax.block_until_ready(forward(x))
    ref = jax.block_until_ready(reference_model(x, params))

    assert out.shape == (N, K), out.shape
    assert jnp.allclose(out, ref, rtol=1e-2, atol=1e-2), (out, ref)
    print("KERNEL_OK")
</pallas_src>

<mosaic_0001>
module attributes {stable_mosaic.version = 11 : i64} {
  func.func @_fused_kernel(%arg0: i32, %arg1: memref<1x16x128xf32, #tpu.memory_space<vmem>>, %arg2: memref<3x128x128xbf16, #tpu.memory_space<vmem>>, %arg3: memref<1x128xf32, #tpu.memory_space<vmem>>, %arg4: memref<3x128x128xbf16, #tpu.memory_space<vmem>>, %arg5: memref<1x128xf32, #tpu.memory_space<vmem>>, %arg6: memref<3x128x256xbf16, #tpu.memory_space<vmem>>, %arg7: memref<1x256xf32, #tpu.memory_space<vmem>>, %arg8: memref<256x128xbf16, #tpu.memory_space<vmem>>, %arg9: memref<1x128xf32, #tpu.memory_space<vmem>>, %arg10: memref<1x1x128xf32, #tpu.memory_space<vmem>>) attributes {dimension_semantics = [#tpu.dimension_semantics<parallel>], iteration_bounds = array<i64: 1>, scalar_prefetch = 0 : i64, scratch_operands = 0 : i64, tpu.core_type = #tpu.core_type<tc>, window_params = [{transform_indices = @transform_0, window_bounds = array<i64: 1, 16, 128>}, {pipeline_mode = #tpu.pipeline_mode<synchronous>, transform_indices = @transform_1, window_bounds = array<i64: 3, 128, 128>}, {pipeline_mode = #tpu.pipeline_mode<synchronous>, transform_indices = @transform_2, window_bounds = array<i64: 1, 128>}, {pipeline_mode = #tpu.pipeline_mode<synchronous>, transform_indices = @transform_3, window_bounds = array<i64: 3, 128, 128>}, {pipeline_mode = #tpu.pipeline_mode<synchronous>, transform_indices = @transform_4, window_bounds = array<i64: 1, 128>}, {pipeline_mode = #tpu.pipeline_mode<synchronous>, transform_indices = @transform_5, window_bounds = array<i64: 3, 128, 256>}, {pipeline_mode = #tpu.pipeline_mode<synchronous>, transform_indices = @transform_6, window_bounds = array<i64: 1, 256>}, {pipeline_mode = #tpu.pipeline_mode<synchronous>, transform_indices = @transform_7, window_bounds = array<i64: 256, 128>}, {pipeline_mode = #tpu.pipeline_mode<synchronous>, transform_indices = @transform_8, window_bounds = array<i64: 1, 128>}, {transform_indices = @transform_9, window_bounds = array<i64: 1, 1, 128>}]} {
    %c0 = arith.constant 0 : index
    %c0_0 = arith.constant 0 : index
    %c0_1 = arith.constant 0 : index
    %0 = vector.load %arg1[%c0, %c0_0, %c0_1] : memref<1x16x128xf32, #tpu.memory_space<vmem>>, vector<1x16x128xf32>
    %1 = vector.shape_cast %0 : vector<1x16x128xf32> to vector<16x128xf32>
    %2 = tpu.iota {dimensions = array<i32: 0>} : vector<16x1xi32>
    %c0_i32 = arith.constant 0 : i32
    %3 = vector.broadcast %c0_i32 : i32 to vector<16x1xi32>
    %4 = arith.cmpi sgt, %2, %3 : vector<16x1xi32>
    %5 = arith.extui %4 : vector<16x1xi1> to vector<16x1xi32>
    %6 = arith.sitofp %5 : vector<16x1xi32> to vector<16x1xf32>
    %c15_i32 = arith.constant 15 : i32
    %7 = vector.broadcast %c15_i32 : i32 to vector<16x1xi32>
    %8 = arith.cmpi slt, %2, %7 : vector<16x1xi32>
    %9 = arith.extui %8 : vector<16x1xi1> to vector<16x1xi32>
    %10 = arith.sitofp %9 : vector<16x1xi32> to vector<16x1xf32>
    %c1_i32 = arith.constant 1 : i32
    %11 = tpu.dynamic_rotate %1 by %c1_i32 dim 0 : vector<16x128xf32>, i32 -> vector<16x128xf32>
    %12 = vector.broadcast %6 : vector<16x1xf32> to vector<16x128xf32>
    %13 = arith.mulf %11, %12 : vector<16x128xf32>
    %c15_i32_2 = arith.constant 15 : i32
    %14 = tpu.dynamic_rotate %1 by %c15_i32_2 dim 0 : vector<16x128xf32>, i32 -> vector<16x128xf32>
    %15 = vector.broadcast %10 : vector<16x1xf32> to vector<16x128xf32>
    %16 = arith.mulf %14, %15 : vector<16x128xf32>
    %17 = arith.truncf %13 : vector<16x128xf32> to vector<16x128xbf16>
    %c0_3 = arith.constant 0 : index
    %c0_4 = arith.constant 0 : index
    %c0_5 = arith.constant 0 : index
    %18 = vector.load %arg2[%c0_3, %c0_4, %c0_5] : memref<3x128x128xbf16, #tpu.memory_space<vmem>>, vector<1x128x128xbf16>
    %19 = vector.shape_cast %18 : vector<1x128x128xbf16> to vector<128x128xbf16>
    %cst = arith.constant dense<0.000000e+00> : vector<16x128xf32>
    %20 = tpu.matmul %17, %19, %cst {dimension_numbers = #tpu.dot_dimension_numbers<[1], [0], [0], [1], [0, 0, 1, 1], [], []>} : vector<16x128xbf16>, vector<128x128xbf16>, vector<16x128xf32> -> vector<16x128xf32>
    %21 = arith.truncf %1 : vector<16x128xf32> to vector<16x128xbf16>
    %c1 = arith.constant 1 : index
    %c0_6 = arith.constant 0 : index
    %c0_7 = arith.constant 0 : index
    %22 = vector.load %arg2[%c1, %c0_6, %c0_7] : memref<3x128x128xbf16, #tpu.memory_space<vmem>>, vector<1x128x128xbf16>
    %23 = vector.shape_cast %22 : vector<1x128x128xbf16> to vector<128x128xbf16>
    %cst_8 = arith.constant dense<0.000000e+00> : vector<16x128xf32>
    %24 = tpu.matmul %21, %23, %cst_8 {dimension_numbers = #tpu.dot_dimension_numbers<[1], [0], [0], [1], [0, 0, 1, 1], [], []>} : vector<16x128xbf16>, vector<128x128xbf16>, vector<16x128xf32> -> vector<16x128xf32>
    %25 = arith.addf %20, %24 : vector<16x128xf32>
    %26 = arith.truncf %16 : vector<16x128xf32> to vector<16x128xbf16>
    %c2 = arith.constant 2 : index
    %c0_9 = arith.constant 0 : index
    %c0_10 = arith.constant 0 : index
    %27 = vector.load %arg2[%c2, %c0_9, %c0_10] : memref<3x128x128xbf16, #tpu.memory_space<vmem>>, vector<1x128x128xbf16>
    %28 = vector.shape_cast %27 : vector<1x128x128xbf16> to vector<128x128xbf16>
    %cst_11 = arith.constant dense<0.000000e+00> : vector<16x128xf32>
    %29 = tpu.matmul %26, %28, %cst_11 {dimension_numbers = #tpu.dot_dimension_numbers<[1], [0], [0], [1], [0, 0, 1, 1], [], []>} : vector<16x128xbf16>, vector<128x128xbf16>, vector<16x128xf32> -> vector<16x128xf32>
    %30 = arith.addf %25, %29 : vector<16x128xf32>
    %c0_12 = arith.constant 0 : index
    %c0_13 = arith.constant 0 : index
    %31 = vector.load %arg3[%c0_12, %c0_13] : memref<1x128xf32, #tpu.memory_space<vmem>>, vector<1x128xf32>
    %32 = vector.broadcast %31 : vector<1x128xf32> to vector<16x128xf32>
    %33 = arith.addf %30, %32 : vector<16x128xf32>
    %cst_14 = arith.constant 0.000000e+00 : f32
    %34 = vector.broadcast %cst_14 : f32 to vector<16x128xf32>
    %35 = arith.maximumf %33, %34 : vector<16x128xf32>
    %c1_i32_15 = arith.constant 1 : i32
    %36 = tpu.dynamic_rotate %35 by %c1_i32_15 dim 0 : vector<16x128xf32>, i32 -> vector<16x128xf32>
    %37 = vector.broadcast %6 : vector<16x1xf32> to vector<16x128xf32>
    %38 = arith.mulf %36, %37 : vector<16x128xf32>
    %c15_i32_16 = arith.constant 15 : i32
    %39 = tpu.dynamic_rotate %35 by %c15_i32_16 dim 0 : vector<16x128xf32>, i32 -> vector<16x128xf32>
    %40 = vector.broadcast %10 : vector<16x1xf32> to vector<16x128xf32>
    %41 = arith.mulf %39, %40 : vector<16x128xf32>
    %42 = arith.truncf %38 : vector<16x128xf32> to vector<16x128xbf16>
    %c0_17 = arith.constant 0 : index
    %c0_18 = arith.constant 0 : index
    %c0_19 = arith.constant 0 : index
    %43 = vector.load %arg4[%c0_17, %c0_18, %c0_19] : memref<3x128x128xbf16, #tpu.memory_space<vmem>>, vector<1x128x128xbf16>
    %44 = vector.shape_cast %43 : vector<1x128x128xbf16> to vector<128x128xbf16>
    %cst_20 = arith.constant dense<0.000000e+00> : vector<16x128xf32>
    %45 = tpu.matmul %42, %44, %cst_20 {dimension_numbers = #tpu.dot_dimension_numbers<[1], [0], [0], [1], [0, 0, 1, 1], [], []>} : vector<16x128xbf16>, vector<128x128xbf16>, vector<16x128xf32> -> vector<16x128xf32>
    %46 = arith.truncf %35 : vector<16x128xf32> to vector<16x128xbf16>
    %c1_21 = arith.constant 1 : index
    %c0_22 = arith.constant 0 : index
    %c0_23 = arith.constant 0 : index
    %47 = vector.load %arg4[%c1_21, %c0_22, %c0_23] : memref<3x128x128xbf16, #tpu.memory_space<vmem>>, vector<1x128x128xbf16>
    %48 = vector.shape_cast %47 : vector<1x128x128xbf16> to vector<128x128xbf16>
    %cst_24 = arith.constant dense<0.000000e+00> : vector<16x128xf32>
    %49 = tpu.matmul %46, %48, %cst_24 {dimension_numbers = #tpu.dot_dimension_numbers<[1], [0], [0], [1], [0, 0, 1, 1], [], []>} : vector<16x128xbf16>, vector<128x128xbf16>, vector<16x128xf32> -> vector<16x128xf32>
    %50 = arith.addf %45, %49 : vector<16x128xf32>
    %51 = arith.truncf %41 : vector<16x128xf32> to vector<16x128xbf16>
    %c2_25 = arith.constant 2 : index
    %c0_26 = arith.constant 0 : index
    %c0_27 = arith.constant 0 : index
    %52 = vector.load %arg4[%c2_25, %c0_26, %c0_27] : memref<3x128x128xbf16, #tpu.memory_space<vmem>>, vector<1x128x128xbf16>
    %53 = vector.shape_cast %52 : vector<1x128x128xbf16> to vector<128x128xbf16>
    %cst_28 = arith.constant dense<0.000000e+00> : vector<16x128xf32>
    %54 = tpu.matmul %51, %53, %cst_28 {dimension_numbers = #tpu.dot_dimension_numbers<[1], [0], [0], [1], [0, 0, 1, 1], [], []>} : vector<16x128xbf16>, vector<128x128xbf16>, vector<16x128xf32> -> vector<16x128xf32>
    %55 = arith.addf %50, %54 : vector<16x128xf32>
    %c0_29 = arith.constant 0 : index
    %c0_30 = arith.constant 0 : index
    %56 = vector.load %arg5[%c0_29, %c0_30] : memref<1x128xf32, #tpu.memory_space<vmem>>, vector<1x128xf32>
    %57 = vector.broadcast %56 : vector<1x128xf32> to vector<16x128xf32>
    %58 = arith.addf %55, %57 : vector<16x128xf32>
    %59 = arith.subf %1, %58 : vector<16x128xf32>
    %c1_i32_31 = arith.constant 1 : i32
    %60 = tpu.dynamic_rotate %59 by %c1_i32_31 dim 0 : vector<16x128xf32>, i32 -> vector<16x128xf32>
    %61 = vector.broadcast %6 : vector<16x1xf32> to vector<16x128xf32>
    %62 = arith.mulf %60, %61 : vector<16x128xf32>
    %c15_i32_32 = arith.constant 15 : i32
    %63 = tpu.dynamic_rotate %59 by %c15_i32_32 dim 0 : vector<16x128xf32>, i32 -> vector<16x128xf32>
    %64 = vector.broadcast %10 : vector<16x1xf32> to vector<16x128xf32>
    %65 = arith.mulf %63, %64 : vector<16x128xf32>
    %66 = arith.truncf %62 : vector<16x128xf32> to vector<16x128xbf16>
    %c0_33 = arith.constant 0 : index
    %c0_34 = arith.constant 0 : index
    %c0_35 = arith.constant 0 : index
    %67 = vector.load %arg6[%c0_33, %c0_34, %c0_35] : memref<3x128x256xbf16, #tpu.memory_space<vmem>>, vector<1x128x256xbf16>
    %68 = vector.shape_cast %67 : vector<1x128x256xbf16> to vector<128x256xbf16>
    %cst_36 = arith.constant dense<0.000000e+00> : vector<16x256xf32>
    %69 = tpu.matmul %66, %68, %cst_36 {dimension_numbers = #tpu.dot_dimension_numbers<[1], [0], [0], [1], [0, 0, 1, 1], [], []>} : vector<16x128xbf16>, vector<128x256xbf16>, vector<16x256xf32> -> vector<16x256xf32>
    %70 = arith.truncf %59 : vector<16x128xf32> to vector<16x128xbf16>
    %c1_37 = arith.constant 1 : index
    %c0_38 = arith.constant 0 : index
    %c0_39 = arith.constant 0 : index
    %71 = vector.load %arg6[%c1_37, %c0_38, %c0_39] : memref<3x128x256xbf16, #tpu.memory_space<vmem>>, vector<1x128x256xbf16>
    %72 = vector.shape_cast %71 : vector<1x128x256xbf16> to vector<128x256xbf16>
    %cst_40 = arith.constant dense<0.000000e+00> : vector<16x256xf32>
    %73 = tpu.matmul %70, %72, %cst_40 {dimension_numbers = #tpu.dot_dimension_numbers<[1], [0], [0], [1], [0, 0, 1, 1], [], []>} : vector<16x128xbf16>, vector<128x256xbf16>, vector<16x256xf32> -> vector<16x256xf32>
    %74 = arith.addf %69, %73 : vector<16x256xf32>
    %75 = arith.truncf %65 : vector<16x128xf32> to vector<16x128xbf16>
    %c2_41 = arith.constant 2 : index
    %c0_42 = arith.constant 0 : index
    %c0_43 = arith.constant 0 : index
    %76 = vector.load %arg6[%c2_41, %c0_42, %c0_43] : memref<3x128x256xbf16, #tpu.memory_space<vmem>>, vector<1x128x256xbf16>
    %77 = vector.shape_cast %76 : vector<1x128x256xbf16> to vector<128x256xbf16>
    %cst_44 = arith.constant dense<0.000000e+00> : vector<16x256xf32>
    %78 = tpu.matmul %75, %77, %cst_44 {dimension_numbers = #tpu.dot_dimension_numbers<[1], [0], [0], [1], [0, 0, 1, 1], [], []>} : vector<16x128xbf16>, vector<128x256xbf16>, vector<16x256xf32> -> vector<16x256xf32>
    %79 = arith.addf %74, %78 : vector<16x256xf32>
    %c0_45 = arith.constant 0 : index
    %c0_46 = arith.constant 0 : index
    %80 = vector.load %arg7[%c0_45, %c0_46] : memref<1x256xf32, #tpu.memory_space<vmem>>, vector<1x256xf32>
    %81 = vector.broadcast %80 : vector<1x256xf32> to vector<16x256xf32>
    %82 = arith.addf %79, %81 : vector<16x256xf32>
    %cst_47 = arith.constant 0.000000e+00 : f32
    %83 = vector.broadcast %cst_47 : f32 to vector<16x256xf32>
    %84 = arith.maximumf %82, %83 : vector<16x256xf32>
    %cst_48 = arith.constant dense<0.000000e+00> : vector<256xf32>
    %85 = vector.multi_reduction <add>, %84, %cst_48 [0] : vector<16x256xf32> to vector<256xf32>
    %86 = vector.shape_cast %85 : vector<256xf32> to vector<1x256xf32>
    %87 = arith.truncf %86 : vector<1x256xf32> to vector<1x256xbf16>
    %c0_49 = arith.constant 0 : index
    %c0_50 = arith.constant 0 : index
    %88 = vector.load %arg8[%c0_49, %c0_50] : memref<256x128xbf16, #tpu.memory_space<vmem>>, vector<256x128xbf16>
    %cst_51 = arith.constant dense<0.000000e+00> : vector<1x128xf32>
    %89 = tpu.matmul %87, %88, %cst_51 {dimension_numbers = #tpu.dot_dimension_numbers<[1], [0], [0], [1], [0, 0, 1, 1], [], []>} : vector<1x256xbf16>, vector<256x128xbf16>, vector<1x128xf32> -> vector<1x128xf32>
    %c0_52 = arith.constant 0 : index
    %c0_53 = arith.constant 0 : index
    %90 = vector.load %arg9[%c0_52, %c0_53] : memref<1x128xf32, #tpu.memory_space<vmem>>, vector<1x128xf32>
    %91 = arith.addf %89, %90 : vector<1x128xf32>
    %92 = vector.shape_cast %91 : vector<1x128xf32> to vector<1x1x128xf32>
    %c0_54 = arith.constant 0 : index
    %c0_55 = arith.constant 0 : index
    %c0_56 = arith.constant 0 : index
    %93 = vector.load %arg10[%c0_54, %c0_55, %c0_56] : memref<1x1x128xf32, #tpu.memory_space<vmem>>, vector<1x1x128xf32>
    tpu.vector_store %arg10[%c0_54, %c0_55, %c0_56], %92 {strides = array<i32>} : memref<1x1x128xf32, #tpu.memory_space<vmem>>, vector<1x1x128xf32>,
    return
  }
  func.func @transform_0(%arg0: i32) -> (i32, i32, i32) {
    %c0_i32 = arith.constant 0 : i32
    %c0_i32_0 = arith.constant 0 : i32
    %c0_i32_1 = arith.constant 0 : i32
    return %arg0, %c0_i32, %c0_i32_0 : i32, i32, i32
  }
  func.func @transform_1(%arg0: i32) -> (i32, i32, i32) {
    %c0_i32 = arith.constant 0 : i32
    %c0_i32_0 = arith.constant 0 : i32
    %c0_i32_1 = arith.constant 0 : i32
    %c0_i32_2 = arith.constant 0 : i32
    return %c0_i32, %c0_i32_0, %c0_i32_1 : i32, i32, i32
  }
  func.func @transform_2(%arg0: i32) -> (i32, i32) {
    %c0_i32 = arith.constant 0 : i32
    %c0_i32_0 = arith.constant 0 : i32
    %c0_i32_1 = arith.constant 0 : i32
    return %c0_i32, %c0_i32_0 : i32, i32
  }
  func.func @transform_3(%arg0: i32) -> (i32, i32, i32) {
    %c0_i32 = arith.constant 0 : i32
    %c0_i32_0 = arith.constant 0 : i32
    %c0_i32_1 = arith.constant 0 : i32
    %c0_i32_2 = arith.constant 0 : i32
    return %c0_i32, %c0_i32_0, %c0_i32_1 : i32, i32, i32
  }
  func.func @transform_4(%arg0: i32) -> (i32, i32) {
    %c0_i32 = arith.constant 0 : i32
    %c0_i32_0 = arith.constant 0 : i32
    %c0_i32_1 = arith.constant 0 : i32
    return %c0_i32, %c0_i32_0 : i32, i32
  }
  func.func @transform_5(%arg0: i32) -> (i32, i32, i32) {
    %c0_i32 = arith.constant 0 : i32
    %c0_i32_0 = arith.constant 0 : i32
    %c0_i32_1 = arith.constant 0 : i32
    %c0_i32_2 = arith.constant 0 : i32
    return %c0_i32, %c0_i32_0, %c0_i32_1 : i32, i32, i32
  }
  func.func @transform_6(%arg0: i32) -> (i32, i32) {
    %c0_i32 = arith.constant 0 : i32
    %c0_i32_0 = arith.constant 0 : i32
    %c0_i32_1 = arith.constant 0 : i32
    return %c0_i32, %c0_i32_0 : i32, i32
  }
  func.func @transform_7(%arg0: i32) -> (i32, i32) {
    %c0_i32 = arith.constant 0 : i32
    %c0_i32_0 = arith.constant 0 : i32
    %c0_i32_1 = arith.constant 0 : i32
    return %c0_i32, %c0_i32_0 : i32, i32
  }
  func.func @transform_8(%arg0: i32) -> (i32, i32) {
    %c0_i32 = arith.constant 0 : i32
    %c0_i32_0 = arith.constant 0 : i32
    %c0_i32_1 = arith.constant 0 : i32
    return %c0_i32, %c0_i32_0 : i32, i32
  }
  func.func @transform_9(%arg0: i32) -> (i32, i32, i32) {
    %c0_i32 = arith.constant 0 : i32
    %c0_i32_0 = arith.constant 0 : i32
    %c0_i32_1 = arith.constant 0 : i32
    return %arg0, %c0_i32, %c0_i32_0 : i32, i32, i32
  }
}

</mosaic_0001>

<llo_original>
// kernel: squeeze.1
$region0: #{squeeze.1}
  %s0 = inlined_call_operand.vmem [shape: f32[20], index: 0, kind: input, shape index: {}]
  %s1 = inlined_call_operand.hbm [shape: f32[2,10], index: 1, kind: output, shape index: {}]
  $region1: #{squeeze.1} parent=0
    #allocation0 [shape = 'u8[1024]{0}', space=vmem, size = 0x400, scoped, tag = 'operand span for operand 1']
    #allocation1 [shape = 's32[1]{0}', space=sflag, size = 0x4, scoped, tag = 'scoped memory for squeeze.1']
    #allocation2 [shape = 'u8[4096]{0}', space=vmem, size = 0x1000, scoped, tag = 'scoped mem for output reshape']
    #allocation3 [shape = 'u8[4096]{0}', space=vmem, size = 0x1000, scoped, tag = 'scoped mem for input reshape']
    %2 = vsyncpa [#allocation1], 0
    %s4 = sshllo.u32 0, 1
    %v5 = vld [vmem:[%s0] sm:%s4]
    %6 = vst [vmem:[#allocation3] sm:%s4] %v5
    %v7 = vld [vmem:[#allocation3] sm:$0x1]
    %vm8 = vcmask 80896
    %9 = vst.msk [vmem:[#allocation2] sm:$0x1] %vm8, %v7
    %v10 = vld [vmem:[#allocation3] sm:$0x1]
    %11 = vrot.lane.b32.xlu0 %v10, 118
    %v12 = vpop.permute.xlu0 %11
    %vm13 = vcmask 80896
    %s14 = scalar_lea.vmem [#allocation2], 1
    %15 = vst.msk [vmem:[%s14] sm:$0x1] %vm13, %v12
    %s17 = sshllo.u32 0, 2
    %v19 = vld [vmem:[#allocation2] sm:%s17]
    %s20 = sshllo.u32 0, 2
    %21 = vst [vmem:[#allocation0] sm:%s20] %v19
    %s23 = ssub.s32 32, 32
    %24 = vsyncadd [#allocation1], %s23
    %s26 = sshll.u32 [#allocation0], 4
    %s27 = int_to_ptr.vmem [resolvable:$true] %s26
    %29 = dma.vmem_to_hbm [thread:$0]  %s27, 32, %s1, [#allocation1]
    %30 = dma.done [#allocation1], 32
    %31 = vsyncpa [#allocation1], 1

// kernel: forward.1
$region0: #{forward.1}
  #allocation0 [shape = 'u32[]', space=smem, size = 0x4, offset = 0x4, fixed_abs, tag = 'smem constant byte address 0x4 - core index']
  #allocation1 [shape = 'u32[144,128]{1,0:T(1,128)}', space=vmem, size = 0x12000, scoped, tag = 'internal scratch']
  %s0 = inlined_call_operand.vmem [shape: f32[1,16,128], index: 0, kind: input, shape index: {}]
  %s1 = inlined_call_operand.vmem [shape: bf16[3,128,128], index: 1, kind: input, shape index: {}]
  %s2 = inlined_call_operand.vmem [shape: f32[1,128], index: 2, kind: input, shape index: {}]
  %s3 = inlined_call_operand.vmem [shape: bf16[3,128,128], index: 3, kind: input, shape index: {}]
  %s4 = inlined_call_operand.vmem [shape: f32[1,128], index: 4, kind: input, shape index: {}]
  %s5 = inlined_call_operand.vmem [shape: bf16[3,128,256], index: 5, kind: input, shape index: {}]
  %s6 = inlined_call_operand.vmem [shape: f32[1,256], index: 6, kind: input, shape index: {}]
  %s7 = inlined_call_operand.vmem [shape: bf16[256,128], index: 7, kind: input, shape index: {}]
  %s8 = inlined_call_operand.vmem [shape: f32[1,128], index: 8, kind: input, shape index: {}]
  %s9 = inlined_call_operand.vmem [shape: f32[1,1,128], index: 9, kind: output, shape index: {}]
  %s10 = sld [smem:[#allocation0]]
  $region46: #{forward.1} parent=0
    _
  %s12 = ssub.s32 1, %s10
  %s13 = scalar_select 0, %s12, %s10
  // Predicated region
  $region2: #{forward.1} parent=0 // pred_check
    _
  $region3: #{forward.1} parent=0 // pred_check_branch
    %15 = sbr.rel (0) target = $region5
  $region4: #{forward.1} parent=0 // pred_region
    _
  $region5: #{forward.1} parent=0 // pred_fallthru
    _
  // Predicated region
  $region6: #{forward.1} parent=0 // pred_check
    _
  $region7: #{forward.1} parent=0 // pred_check_branch
    %17 = sbr.rel (0) target = $region9
  $region8: #{forward.1} parent=0 // pred_region
    _
  $region9: #{forward.1} parent=0 // pred_fallthru
    _
  // Predicated region
  $region10: #{forward.1} parent=0 // pred_check
    _
  $region11: #{forward.1} parent=0 // pred_check_branch
    %19 = sbr.rel (0) target = $region13
  $region12: #{forward.1} parent=0 // pred_region
    _
  $region13: #{forward.1} parent=0 // pred_fallthru
    _
  // Predicated region
  $region14: #{forward.1} parent=0 // pred_check
    _
  $region15: #{forward.1} parent=0 // pred_check_branch
    %21 = sbr.rel (0) target = $region17
  $region16: #{forward.1} parent=0 // pred_region
    _
  $region17: #{forward.1} parent=0 // pred_fallthru
    _
  // Predicated region
  $region18: #{forward.1} parent=0 // pred_check
    _
  $region19: #{forward.1} parent=0 // pred_check_branch
    %23 = sbr.rel (0) target = $region21
  $region20: #{forward.1} parent=0 // pred_region
    _
  $region21: #{forward.1} parent=0 // pred_fallthru
    _
  // Predicated region
  $region22: #{forward.1} parent=0 // pred_check
    _
  $region23: #{forward.1} parent=0 // pred_check_branch
    %25 = sbr.rel (0) target = $region25
  $region24: #{forward.1} parent=0 // pred_region
    _
  $region25: #{forward.1} parent=0 // pred_fallthru
    _
  // Predicated region
  $region26: #{forward.1} parent=0 // pred_check
    _
  $region27: #{forward.1} parent=0 // pred_check_branch
    %27 = sbr.rel (0) target = $region29
  $region28: #{forward.1} parent=0 // pred_region
    _
  $region29: #{forward.1} parent=0 // pred_fallthru
    _
  // Predicated region
  $region30: #{forward.1} parent=0 // pred_check
    _
  $region31: #{forward.1} parent=0 // pred_check_branch
    %29 = sbr.rel (0) target = $region33
  $region32: #{forward.1} parent=0 // pred_region
    _
  $region33: #{forward.1} parent=0 // pred_fallthru
    _
  // Predicated region
  $region34: #{forward.1} parent=0 // pred_check
    _
  $region35: #{forward.1} parent=0 // pred_check_branch
    %31 = sbr.rel (0) target = $region37
  $region36: #{forward.1} parent=0 // pred_region
    _
  $region37: #{forward.1} parent=0 // pred_fallthru
    _
  %v33 = vld [vmem:[%s0] sm:$0xff]
  %v34 = vld [vmem:[%s0 + $0x8] sm:$0xff]
  %v35 = vlaneseq
  %v36 = vshrl.u32 %v35, 7
  %v37 = vadd.s32 %v36, 8
  %vm38 = vcmp.gt.s32.totalorder %v36, 0
  %vm39 = vcmp.gt.s32.totalorder %v37, 0
  %v40 = vsel %vm38, 1, 0
  %v41 = vsel %vm39, 1, 0
  %v42 = vcvt.s32.f32 %v40
  %v43 = vcvt.s32.f32 %v41
  %vm44 = vcmp.lt.s32.totalorder %v36, 15
  %vm45 = vcmp.lt.s32.totalorder %v37, 15
  %v46 = vsel %vm44, 1, 0
  %v47 = vsel %vm45, 1, 0
  %v48 = vcvt.s32.f32 %v46
  %v49 = vcvt.s32.f32 %v47
  %v50 = vrot.slane %v33, 7
  %v51 = vrot.slane %v34, 7
  %vm52 = vcmp.lt.s32.totalorder %v36, 1
  %v53 = vsel %vm52, %v50, %v51
  %v54 = vsel %vm52, %v51, %v50
  %v55 = vmul.f32 %v54, %v42
  %v56 = vmul.f32 %v53, %v43
  %v57 = vrot.slane %v33, 1
  %v58 = vrot.slane %v34, 1
  %vm59 = vcmp.lt.s32.totalorder %v36, 7
  %v60 = vsel %vm59, %v57, %v58
  %v61 = vsel %vm59, %v58, %v57
  %v62 = vmul.f32 %v60, %v48
  %v63 = vmul.f32 %v61, %v49
  %v64 = vpack.c.bf16 %v56, %v55
  %v65 = vld [vmem:[%s1] sm:$0xf]
  %v66 = vld [vmem:[%s1 + $0x4] sm:$0xf]
  %v67 = vld [vmem:[%s1 + $0x8] sm:$0xf]
  %v68 = vld [vmem:[%s1 + $0xc] sm:$0xf]
  %v69 = vld [vmem:[%s1 + $0x10] sm:$0xf]
  %v70 = vld [vmem:[%s1 + $0x14] sm:$0xf]
  %v71 = vld [vmem:[%s1 + $0x18] sm:$0xf]
  %v72 = vld [vmem:[%s1 + $0x1c] sm:$0xf]
  %v73 = vld [vmem:[%s1 + $0x20] sm:$0xf]
  %v74 = vld [vmem:[%s1 + $0x24] sm:$0xf]
  %v75 = vld [vmem:[%s1 + $0x28] sm:$0xf]
  %v76 = vld [vmem:[%s1 + $0x2c] sm:$0xf]
  %v77 = vld [vmem:[%s1 + $0x30] sm:$0xf]
  %v78 = vld [vmem:[%s1 + $0x34] sm:$0xf]
  %v79 = vld [vmem:[%s1 + $0x38] sm:$0xf]
  %v80 = vld [vmem:[%s1 + $0x3c] sm:$0xf]
  %v81 = vpack.c.bf16 %v34, %v33
  %s82 = scalar_lea.vmem %s1, 64
  %v83 = vld [vmem:[%s82] sm:$0xf]
  %v84 = vld [vmem:[%s82 + $0x4] sm:$0xf]
  %v85 = vld [vmem:[%s82 + $0x8] sm:$0xf]
  %v86 = vld [vmem:[%s82 + $0xc] sm:$0xf]
  %v87 = vld [vmem:[%s82 + $0x10] sm:$0xf]
  %v88 = vld [vmem:[%s82 + $0x14] sm:$0xf]
  %v89 = vld [vmem:[%s82 + $0x18] sm:$0xf]
  %v90 = vld [vmem:[%s82 + $0x1c] sm:$0xf]
  %v91 = vld [vmem:[%s82 + $0x20] sm:$0xf]
  %v92 = vld [vmem:[%s82 + $0x24] sm:$0xf]
  %v93 = vld [vmem:[%s82 + $0x28] sm:$0xf]
  %v94 = vld [vmem:[%s82 + $0x2c] sm:$0xf]
  %v95 = vld [vmem:[%s82 + $0x30] sm:$0xf]
  %v96 = vld [vmem:[%s82 + $0x34] sm:$0xf]
  %v97 = vld [vmem:[%s82 + $0x38] sm:$0xf]
  %v98 = vld [vmem:[%s82 + $0x3c] sm:$0xf]
  %v115 = vunpack.c.l.b16 %v83
  %v116 = vunpack.c.l.b16 %v84
  %v117 = vunpack.c.l.b16 %v85
  %v118 = vunpack.c.l.b16 %v86
  %v119 = vunpack.c.l.b16 %v87
  %v120 = vunpack.c.l.b16 %v88
  %v121 = vunpack.c.l.b16 %v89
  %v122 = vunpack.c.l.b16 %v90
  %v123 = vunpack.c.l.b16 %v91
  %v124 = vunpack.c.l.b16 %v92
  %v125 = vunpack.c.l.b16 %v93
  %v126 = vunpack.c.l.b16 %v94
  %v127 = vunpack.c.l.b16 %v95
  %v128 = vunpack.c.l.b16 %v96
  %v129 = vunpack.c.l.b16 %v97
  %v130 = vunpack.c.l.b16 %v98
  %v131 = vpack.c.b16 %v116, %v115
  %v132 = vpack.c.b16 %v118, %v117
  %v133 = vpack.c.b16 %v120, %v119
  %v134 = vpack.c.b16 %v122, %v121
  %v135 = vpack.c.b16 %v124, %v123
  %v136 = vpack.c.b16 %v126, %v125
  %v137 = vpack.c.b16 %v128, %v127
  %v138 = vpack.c.b16 %v130, %v129
  %147 = vmatprep.subr.bf16.mxu0 0
  %148 = vmatpush1.bf16.msra.mxu0 %v131
  %149 = vmatprep.subr.bf16.mxu0 0
  %150 = vmatpush1.bf16.msra.mxu0 %v132
  %151 = vmatprep.subr.bf16.mxu0 0
  %152 = vmatpush1.bf16.msra.mxu0 %v133
  %153 = vmatprep.subr.bf16.mxu0 0
  %154 = vmatpush1.bf16.msra.mxu0 %v134
  %155 = vmatprep.subr.bf16.mxu0 0
  %156 = vmatpush1.bf16.msra.mxu0 %v135
  %157 = vmatprep.subr.bf16.mxu0 0
  %158 = vmatpush1.bf16.msra.mxu0 %v136
  %159 = vmatprep.subr.bf16.mxu0 0
  %160 = vmatpush1.bf16.msra.mxu0 %v137
  %161 = vmatprep.subr.bf16.mxu0 0
  %162 = vmatpush1.bf16.msra.mxu0 %v138
  %163 = vmatprep.subr.bf16.mxu0 0
  %164 = vmatpush1.bf16.msra.mxu0 0
  %165 = vmatprep.subr.bf16.mxu0 0
  %166 = vmatpush1.bf16.msra.mxu0 0
  %167 = vmatprep.subr.bf16.mxu0 0
  %168 = vmatpush1.bf16.msra.mxu0 0
  %169 = vmatprep.subr.bf16.mxu0 0
  %170 = vmatpush1.bf16.msra.mxu0 0
  %171 = vmatprep.subr.bf16.mxu0 0
  %172 = vmatpush1.bf16.msra.mxu0 0
  %173 = vmatprep.subr.bf16.mxu0 0
  %174 = vmatpush1.bf16.msra.mxu0 0
  %175 = vmatprep.subr.bf16.mxu0 0
  %176 = vmatpush1.bf16.msra.mxu0 0
  %177 = vmatprep.subr.bf16.mxu0 0
  %178 = vmatpush1.bf16.msra.mxu0 0
  %179 = vmatprep.mubr.bf16.mxu0 0
  %180 = vmatmul.mubr.bf16.gmra.mrb[0].mxu0 %v81
  %v181 = vpop.f32.mrb[0].mxu0
  %v182 = vadd.f32 0.0, %v181
  %v183 = vpop.f32.mrb[0].mxu0
  %v184 = vpop.f32.mrb[0].mxu0
  %v185 = vadd.f32 0.0, %v184
  %v186 = vpop.f32.mrb[0].mxu0
  %187 = vdwg.mxu0
  %v204 = vunpack.c.l.b16 %v65
  %v205 = vunpack.c.l.b16 %v66
  %v206 = vunpack.c.l.b16 %v67
  %v207 = vunpack.c.l.b16 %v68
  %v208 = vunpack.c.l.b16 %v69
  %v209 = vunpack.c.l.b16 %v70
  %v210 = vunpack.c.l.b16 %v71
  %v211 = vunpack.c.l.b16 %v72
  %v212 = vunpack.c.l.b16 %v73
  %v213 = vunpack.c.l.b16 %v74
  %v214 = vunpack.c.l.b16 %v75
  %v215 = vunpack.c.l.b16 %v76
  %v216 = vunpack.c.l.b16 %v77
  %v217 = vunpack.c.l.b16 %v78
  %v218 = vunpack.c.l.b16 %v79
  %v219 = vunpack.c.l.b16 %v80
  %v220 = vpack.c.b16 %v205, %v204
  %v221 = vpack.c.b16 %v207, %v206
  %v222 = vpack.c.b16 %v209, %v208
  %v223 = vpack.c.b16 %v211, %v210
  %v224 = vpack.c.b16 %v213, %v212
  %v225 = vpack.c.b16 %v215, %v214
  %v226 = vpack.c.b16 %v217, %v216
  %v227 = vpack.c.b16 %v219, %v218
  %236 = vmatprep.subr.bf16.mxu0 0
  %237 = vmatpush1.bf16.msra.mxu0 %v220
  %238 = vmatprep.subr.bf16.mxu0 0
  %239 = vmatpush1.bf16.msra.mxu0 %v221
  %240 = vmatprep.subr.bf16.mxu0 0
  %241 = vmatpush1.bf16.msra.mxu0 %v222
  %242 = vmatprep.subr.bf16.mxu0 0
  %243 = vmatpush1.bf16.msra.mxu0 %v223
  %244 = vmatprep.subr.bf16.mxu0 0
  %245 = vmatpush1.bf16.msra.mxu0 %v224
  %246 = vmatprep.subr.bf16.mxu0 0
  %247 = vmatpush1.bf16.msra.mxu0 %v225
  %248 = vmatprep.subr.bf16.mxu0 0
  %249 = vmatpush1.bf16.msra.mxu0 %v226
  %250 = vmatprep.subr.bf16.mxu0 0
  %251 = vmatpush1.bf16.msra.mxu0 %v227
  %252 = vmatprep.subr.bf16.mxu0 0
  %253 = vmatpush1.bf16.msra.mxu0 0
  %254 = vmatprep.subr.bf16.mxu0 0
  %255 = vmatpush1.bf16.msra.mxu0 0
  %256 = vmatprep.subr.bf16.mxu0 0
  %257 = vmatpush1.bf16.msra.mxu0 0
  %258 = vmatprep.subr.bf16.mxu0 0
  %259 = vmatpush1.bf16.msra.mxu0 0
  %260 = vmatprep.subr.bf16.mxu0 0
  %261 = vmatpush1.bf16.msra.mxu0 0
  %262 = vmatprep.subr.bf16.mxu0 0
  %263 = vmatpush1.bf16.msra.mxu0 0
  %264 = vmatprep.subr.bf16.mxu0 0
  %265 = vmatpush1.bf16.msra.mxu0 0
  %266 = vmatprep.subr.bf16.mxu0 0
  %267 = vmatpush1.bf16.msra.mxu0 0
  %268 = vmatprep.mubr.bf16.mxu0 0
  %269 = vmatmul.mubr.bf16.gmra.mrb[0].mxu0 %v64
  %v270 = vpop.f32.mrb[0].mxu0
  %v271 = vadd.f32 %v182, %v270
  %v272 = vpop.f32.mrb[0].mxu0
  %v273 = vpop.f32.mrb[0].mxu0
  %v274 = vadd.f32 %v185, %v273
  %v275 = vpop.f32.mrb[0].mxu0
  %276 = vdwg.mxu0
  %v277 = vpack.c.bf16 %v63, %v62
  %s278 = scalar_lea.vmem %s1, 128
  %v279 = vld [vmem:[%s278] sm:$0xf]
  %v280 = vld [vmem:[%s278 + $0x4] sm:$0xf]
  %v281 = vld [vmem:[%s278 + $0x8] sm:$0xf]
  %v282 = vld [vmem:[%s278 + $0xc] sm:$0xf]
  %v283 = vld [vmem:[%s278 + $0x10] sm:$0xf]
  %v284 = vld [vmem:[%s278 + $0x14] sm:$0xf]
  %v285 = vld [vmem:[%s278 + $0x18] sm:$0xf]
  %v286 = vld [vmem:[%s278 + $0x1c] sm:$0xf]
  %v287 = vld [vmem:[%s278 + $0x20] sm:$0xf]
  %v288 = vld [vmem:[%s278 + $0x24] sm:$0xf]
  %v289 = vld [vmem:[%s278 + $0x28] sm:$0xf]
  %v290 = vld [vmem:[%s278 + $0x2c] sm:$0xf]
  %v291 = vld [vmem:[%s278 + $0x30] sm:$0xf]
  %v292 = vld [vmem:[%s278 + $0x34] sm:$0xf]
  %v293 = vld [vmem:[%s278 + $0x38] sm:$0xf]
  %v294 = vld [vmem:[%s278 + $0x3c] sm:$0xf]
  %v311 = vunpack.c.l.b16 %v279
  %v312 = vunpack.c.l.b16 %v280
  %v313 = vunpack.c.l.b16 %v281
  %v314 = vunpack.c.l.b16 %v282
  %v315 = vunpack.c.l.b16 %v283
  %v316 = vunpack.c.l.b16 %v284
  %v317 = vunpack.c.l.b16 %v285
  %v318 = vunpack.c.l.b16 %v286
  %v319 = vunpack.c.l.b16 %v287
  %v320 = vunpack.c.l.b16 %v288
  %v321 = vunpack.c.l.b16 %v289
  %v322 = vunpack.c.l.b16 %v290
  %v323 = vunpack.c.l.b16 %v291
  %v324 = vunpack.c.l.b16 %v292
  %v325 = vunpack.c.l.b16 %v293
  %v326 = vunpack.c.l.b16 %v294
  %v327 = vpack.c.b16 %v312, %v311
  %v328 = vpack.c.b16 %v314, %v313
  %v329 = vpack.c.b16 %v316, %v315
  %v330 = vpack.c.b16 %v318, %v317
  %v331 = vpack.c.b16 %v320, %v319
  %v332 = vpack.c.b16 %v322, %v321
  %v333 = vpack.c.b16 %v324, %v323
  %v334 = vpack.c.b16 %v326, %v325
  %343 = vmatprep.subr.bf16.mxu0 0
  %344 = vmatpush1.bf16.msra.mxu0 %v327
  %345 = vmatprep.subr.bf16.mxu0 0
  %346 = vmatpush1.bf16.msra.mxu0 %v328
  %347 = vmatprep.subr.bf16.mxu0 0
  %348 = vmatpush1.bf16.msra.mxu0 %v329
  %349 = vmatprep.subr.bf16.mxu0 0
  %350 = vmatpush1.bf16.msra.mxu0 %v330
  %351 = vmatprep.subr.bf16.mxu0 0
  %352 = vmatpush1.bf16.msra.mxu0 %v331
  %353 = vmatprep.subr.bf16.mxu0 0
  %354 = vmatpush1.bf16.msra.mxu0 %v332
  %355 = vmatprep.subr.bf16.mxu0 0
  %356 = vmatpush1.bf16.msra.mxu0 %v333
  %357 = vmatprep.subr.bf16.mxu0 0
  %358 = vmatpush1.bf16.msra.mxu0 %v334
  %359 = vmatprep.subr.bf16.mxu0 0
  %360 = vmatpush1.bf16.msra.mxu0 0
  %361 = vmatprep.subr.bf16.mxu0 0
  %362 = vmatpush1.bf16.msra.mxu0 0
  %363 = vmatprep.subr.bf16.mxu0 0
  %364 = vmatpush1.bf16.msra.mxu0 0
  %365 = vmatprep.subr.bf16.mxu0 0
  %366 = vmatpush1.bf16.msra.mxu0 0
  %367 = vmatprep.subr.bf16.mxu0 0
  %368 = vmatpush1.bf16.msra.mxu0 0
  %369 = vmatprep.subr.bf16.mxu0 0
  %370 = vmatpush1.bf16.msra.mxu0 0
  %371 = vmatprep.subr.bf16.mxu0 0
  %372 = vmatpush1.bf16.msra.mxu0 0
  %373 = vmatprep.subr.bf16.mxu0 0
  %374 = vmatpush1.bf16.msra.mxu0 0
  %375 = vmatprep.mubr.bf16.mxu0 0
  %376 = vmatmul.mubr.bf16.gmra.mrb[0].mxu0 %v277
  %v377 = vpop.f32.mrb[0].mxu0
  %v378 = vadd.f32 0.0, %v377
  %v379 = vpop.f32.mrb[0].mxu0
  %v380 = vpop.f32.mrb[0].mxu0
  %v381 = vadd.f32 0.0, %v380
  %v382 = vpop.f32.mrb[0].mxu0
  %383 = vdwg.mxu0
  %v384 = vadd.f32 %v271, %v378
  %v385 = vadd.f32 %v274, %v381
  %v386 = vld [vmem:[%s2] sm:$0x1]
  %v388 = vlaneseq
  %v389 = vshrl.u32 %v388, 7
  %v390 = vsub.s32 0, %v389
  %v391 = vrot.slane %v386, %v390
  %v393 = vadd.f32 %v384, %v391
  %v394 = vadd.f32 %v385, %v391
  %v395 = vmax.f32 %v393, 0.0
  %v396 = vmax.f32 %v394, 0.0
  %v397 = vrot.slane %v395, 7
  %v398 = vrot.slane %v396, 7
  %v399 = vsel %vm52, %v397, %v398
  %v400 = vsel %vm52, %v398, %v397
  %v401 = vmul.f32 %v400, %v42
  %v402 = vmul.f32 %v399, %v43
  %v403 = vrot.slane %v395, 1
  %v404 = vrot.slane %v396, 1
  %v405 = vsel %vm59, %v403, %v404
  %v406 = vsel %vm59, %v404, %v403
  %v407 = vmul.f32 %v405, %v48
  %v408 = vmul.f32 %v406, %v49
  %v409 = vpack.c.bf16 %v402, %v401
  %v410 = vld [vmem:[%s3] sm:$0xf]
  %v411 = vld [vmem:[%s3 + $0x4] sm:$0xf]
  %v412 = vld [vmem:[%s3 + $0x8] sm:$0xf]
  %v413 = vld [vmem:[%s3 + $0xc] sm:$0xf]
  %v414 = vld [vmem:[%s3 + $0x10] sm:$0xf]
  %v415 = vld [vmem:[%s3 + $0x14] sm:$0xf]
  %v416 = vld [vmem:[%s3 + $0x18] sm:$0xf]
  %v417 = vld [vmem:[%s3 + $0x1c] sm:$0xf]
  %v418 = vld [vmem:[%s3 + $0x20] sm:$0xf]
  %v419 = vld [vmem:[%s3 + $0x24] sm:$0xf]
  %v420 = vld [vmem:[%s3 + $0x28] sm:$0xf]
  %v421 = vld [vmem:[%s3 + $0x2c] sm:$0xf]
  %v422 = vld [vmem:[%s3 + $0x30] sm:$0xf]
  %v423 = vld [vmem:[%s3 + $0x34] sm:$0xf]
  %v424 = vld [vmem:[%s3 + $0x38] sm:$0xf]
  %v425 = vld [vmem:[%s3 + $0x3c] sm:$0xf]
  %v426 = vpack.c.bf16 %v396, %v395
  %s427 = scalar_lea.vmem %s3, 64
  %v428 = vld [vmem:[%s427] sm:$0xf]
  %v429 = vld [vmem:[%s427 + $0x4] sm:$0xf]
  %v430 = vld [vmem:[%s427 + $0x8] sm:$0xf]
  %v431 = vld [vmem:[%s427 + $0xc] sm:$0xf]
  %v432 = vld [vmem:[%s427 + $0x10] sm:$0xf]
  %v433 = vld [vmem:[%s427 + $0x14] sm:$0xf]
  %v434 = vld [vmem:[%s427 + $0x18] sm:$0xf]
  %v435 = vld [vmem:[%s427 + $0x1c] sm:$0xf]
  %v436 = vld [vmem:[%s427 + $0x20] sm:$0xf]
  %v437 = vld [vmem:[%s427 + $0x24] sm:$0xf]
  %v438 = vld [vmem:[%s427 + $0x28] sm:$0xf]
  %v439 = vld [vmem:[%s427 + $0x2c] sm:$0xf]
  %v440 = vld [vmem:[%s427 + $0x30] sm:$0xf]
  %v441 = vld [vmem:[%s427 + $0x34] sm:$0xf]
  %v442 = vld [vmem:[%s427 + $0x38] sm:$0xf]
  %v443 = vld [vmem:[%s427 + $0x3c] sm:$0xf]
  %v460 = vunpack.c.l.b16 %v428
  %v461 = vunpack.c.l.b16 %v429
  %v462 = vunpack.c.l.b16 %v430
  %v463 = vunpack.c.l.b16 %v431
  %v464 = vunpack.c.l.b16 %v432
  %v465 = vunpack.c.l.b16 %v433
  %v466 = vunpack.c.l.b16 %v434
  %v467 = vunpack.c.l.b16 %v435
  %v468 = vunpack.c.l.b16 %v436
  %v469 = vunpack.c.l.b16 %v437
  %v470 = vunpack.c.l.b16 %v438
  %v471 = vunpack.c.l.b16 %v439
  %v472 = vunpack.c.l.b16 %v440
  %v473 = vunpack.c.l.b16 %v441
  %v474 = vunpack.c.l.b16 %v442
  %v475 = vunpack.c.l.b16 %v443
  %v476 = vpack.c.b16 %v461, %v460
  %v477 = vpack.c.b16 %v463, %v462
  %v478 = vpack.c.b16 %v465, %v464
  %v479 = vpack.c.b16 %v467, %v466
  %v480 = vpack.c.b16 %v469, %v468
  %v481 = vpack.c.b16 %v471, %v470
  %v482 = vpack.c.b16 %v473, %v472
  %v483 = vpack.c.b16 %v475, %v474
  %492 = vmatprep.subr.bf16.mxu0 0
  %493 = vmatpush1.bf16.msra.mxu0 %v476
  %494 = vmatprep.subr.bf16.mxu0 0
  %495 = vmatpush1.bf16.msra.mxu0 %v477
  %496 = vmatprep.subr.bf16.mxu0 0
  %497 = vmatpush1.bf16.msra.mxu0 %v478
  %498 = vmatprep.subr.bf16.mxu0 0
  %499 = vmatpush1.bf16.msra.mxu0 %v479
  %500 = vmatprep.subr.bf16.mxu0 0
  %501 = vmatpush1.bf16.msra.mxu0 %v480
  %502 = vmatprep.subr.bf16.mxu0 0
  %503 = vmatpush1.bf16.msra.mxu0 %v481
  %504 = vmatprep.subr.bf16.mxu0 0
  %505 = vmatpush1.bf16.msra.mxu0 %v482
  %506 = vmatprep.subr.bf16.mxu0 0
  %507 = vmatpush1.bf16.msra.mxu0 %v483
  %508 = vmatprep.subr.bf16.mxu0 0
  %509 = vmatpush1.bf16.msra.mxu0 0
  %510 = vmatprep.subr.bf16.mxu0 0
  %511 = vmatpush1.bf16.msra.mxu0 0
  %512 = vmatprep.subr.bf16.mxu0 0
  %513 = vmatpush1.bf16.msra.mxu0 0
  %514 = vmatprep.subr.bf16.mxu0 0
  %515 = vmatpush1.bf16.msra.mxu0 0
  %516 = vmatprep.subr.bf16.mxu0 0
  %517 = vmatpush1.bf16.msra.mxu0 0
  %518 = vmatprep.subr.bf16.mxu0 0
  %519 = vmatpush1.bf16.msra.mxu0 0
  %520 = vmatprep.subr.bf16.mxu0 0
  %521 = vmatpush1.bf16.msra.mxu0 0
  %522 = vmatprep.subr.bf16.mxu0 0
  %523 = vmatpush1.bf16.msra.mxu0 0
  %524 = vmatprep.mubr.bf16.mxu0 0
  %525 = vmatmul.mubr.bf16.gmra.mrb[0].mxu0 %v426
  %v526 = vpop.f32.mrb[0].mxu0
  %v527 = vadd.f32 0.0, %v526
  %v528 = vpop.f32.mrb[0].mxu0
  %v529 = vpop.f32.mrb[0].mxu0
  %v530 = vadd.f32 0.0, %v529
  %v531 = vpop.f32.mrb[0].mxu0
  %532 = vdwg.mxu0
  %v549 = vunpack.c.l.b16 %v410
  %v550 = vunpack.c.l.b16 %v411
  %v551 = vunpack.c.l.b16 %v412
  %v552 = vunpack.c.l.b16 %v413
  %v553 = vunpack.c.l.b16 %v414
  %v554 = vunpack.c.l.b16 %v415
  %v555 = vunpack.c.l.b16 %v416
  %v556 = vunpack.c.l.b16 %v417
  %v557 = vunpack.c.l.b16 %v418
  %v558 = vunpack.c.l.b16 %v419
  %v559 = vunpack.c.l.b16 %v420
  %v560 = vunpack.c.l.b16 %v421
  %v561 = vunpack.c.l.b16 %v422
  %v562 = vunpack.c.l.b16 %v423
  %v563 = vunpack.c.l.b16 %v424
  %v564 = vunpack.c.l.b16 %v425
  %v565 = vpack.c.b16 %v550, %v549
  %v566 = vpack.c.b16 %v552, %v551
  %v567 = vpack.c.b16 %v554, %v553
  %v568 = vpack.c.b16 %v556, %v555
  %v569 = vpack.c.b16 %v558, %v557
  %v570 = vpack.c.b16 %v560, %v559
  %v571 = vpack.c.b16 %v562, %v561
  %v572 = vpack.c.b16 %v564, %v563
  %581 = vmatprep.subr.bf16.mxu0 0
  %582 = vmatpush1.bf16.msra.mxu0 %v565
  %583 = vmatprep.subr.bf16.mxu0 0
  %584 = vmatpush1.bf16.msra.mxu0 %v566
  %585 = vmatprep.subr.bf16.mxu0 0
  %586 = vmatpush1.bf16.msra.mxu0 %v567
  %587 = vmatprep.subr.bf16.mxu0 0
  %588 = vmatpush1.bf16.msra.mxu0 %v568
  %589 = vmatprep.subr.bf16.mxu0 0
  %590 = vmatpush1.bf16.msra.mxu0 %v569
  %591 = vmatprep.subr.bf16.mxu0 0
  %592 = vmatpush1.bf16.msra.mxu0 %v570
  %593 = vmatprep.subr.bf16.mxu0 0
  %594 = vmatpush1.bf16.msra.mxu0 %v571
  %595 = vmatprep.subr.bf16.mxu0 0
  %596 = vmatpush1.bf16.msra.mxu0 %v572
  %597 = vmatprep.subr.bf16.mxu0 0
  %598 = vmatpush1.bf16.msra.mxu0 0
  %599 = vmatprep.subr.bf16.mxu0 0
  %600 = vmatpush1.bf16.msra.mxu0 0
  %601 = vmatprep.subr.bf16.mxu0 0
  %602 = vmatpush1.bf16.msra.mxu0 0
  %603 = vmatprep.subr.bf16.mxu0 0
  %604 = vmatpush1.bf16.msra.mxu0 0
  %605 = vmatprep.subr.bf16.mxu0 0
  %606 = vmatpush1.bf16.msra.mxu0 0
  %607 = vmatprep.subr.bf16.mxu0 0
  %608 = vmatpush1.bf16.msra.mxu0 0
  %609 = vmatprep.subr.bf16.mxu0 0
  %610 = vmatpush1.bf16.msra.mxu0 0
  %611 = vmatprep.subr.bf16.mxu0 0
  %612 = vmatpush1.bf16.msra.mxu0 0
  %613 = vmatprep.mubr.bf16.mxu0 0
  %614 = vmatmul.mubr.bf16.gmra.mrb[0].mxu0 %v409
  %v615 = vpop.f32.mrb[0].mxu0
  %v616 = vadd.f32 %v527, %v615
  %v617 = vpop.f32.mrb[0].mxu0
  %v618 = vpop.f32.mrb[0].mxu0
  %v619 = vadd.f32 %v530, %v618
  %v620 = vpop.f32.mrb[0].mxu0
  %621 = vdwg.mxu0
  %v622 = vpack.c.bf16 %v408, %v407
  %s623 = scalar_lea.vmem %s3, 128
  %v624 = vld [vmem:[%s623] sm:$0xf]
  %v625 = vld [vmem:[%s623 + $0x4] sm:$0xf]
  %v626 = vld [vmem:[%s623 + $0x8] sm:$0xf]
  %v627 = vld [vmem:[%s623 + $0xc] sm:$0xf]
  %v628 = vld [vmem:[%s623 + $0x10] sm:$0xf]
  %v629 = vld [vmem:[%s623 + $0x14] sm:$0xf]
  %v630 = vld [vmem:[%s623 + $0x18] sm:$0xf]
  %v631 = vld [vmem:[%s623 + $0x1c] sm:$0xf]
  %v632 = vld [vmem:[%s623 + $0x20] sm:$0xf]
  %v633 = vld [vmem:[%s623 + $0x24] sm:$0xf]
  %v634 = vld [vmem:[%s623 + $0x28] sm:$0xf]
  %v635 = vld [vmem:[%s623 + $0x2c] sm:$0xf]
  %v636 = vld [vmem:[%s623 + $0x30] sm:$0xf]
  %v637 = vld [vmem:[%s623 + $0x34] sm:$0xf]
  %v638 = vld [vmem:[%s623 + $0x38] sm:$0xf]
  %v639 = vld [vmem:[%s623 + $0x3c] sm:$0xf]
  %v656 = vunpack.c.l.b16 %v624
  %v657 = vunpack.c.l.b16 %v625
  %v658 = vunpack.c.l.b16 %v626
  %v659 = vunpack.c.l.b16 %v627
  %v660 = vunpack.c.l.b16 %v628
  %v661 = vunpack.c.l.b16 %v629
  %v662 = vunpack.c.l.b16 %v630
  %v663 = vunpack.c.l.b16 %v631
  %v664 = vunpack.c.l.b16 %v632
  %v665 = vunpack.c.l.b16 %v633
  %v666 = vunpack.c.l.b16 %v634
  %v667 = vunpack.c.l.b16 %v635
  %v668 = vunpack.c.l.b16 %v636
  %v669 = vunpack.c.l.b16 %v637
  %v670 = vunpack.c.l.b16 %v638
  %v671 = vunpack.c.l.b16 %v639
  %v672 = vpack.c.b16 %v657, %v656
  %v673 = vpack.c.b16 %v659, %v658
  %v674 = vpack.c.b16 %v661, %v660
  %v675 = vpack.c.b16 %v663, %v662
  %v676 = vpack.c.b16 %v665, %v664
  %v677 = vpack.c.b16 %v667, %v666
  %v678 = vpack.c.b16 %v669, %v668
  %v679 = vpack.c.b16 %v671, %v670
  %688 = vmatprep.subr.bf16.mxu0 0
  %689 = vmatpush1.bf16.msra.mxu0 %v672
  %690 = vmatprep.subr.bf16.mxu0 0
  %691 = vmatpush1.bf16.msra.mxu0 %v673
  %692 = vmatprep.subr.bf16.mxu0 0
  %693 = vmatpush1.bf16.msra.mxu0 %v674
  %694 = vmatprep.subr.bf16.mxu0 0
  %695 = vmatpush1.bf16.msra.mxu0 %v675
  %696 = vmatprep.subr.bf16.mxu0 0
  %697 = vmatpush1.bf16.msra.mxu0 %v676
  %698 = vmatprep.subr.bf16.mxu0 0
  %699 = vmatpush1.bf16.msra.mxu0 %v677
  %700 = vmatprep.subr.bf16.mxu0 0
  %701 = vmatpush1.bf16.msra.mxu0 %v678
  %702 = vmatprep.subr.bf16.mxu0 0
  %703 = vmatpush1.bf16.msra.mxu0 %v679
  %704 = vmatprep.subr.bf16.mxu0 0
  %705 = vmatpush1.bf16.msra.mxu0 0
  %706 = vmatprep.subr.bf16.mxu0 0
  %707 = vmatpush1.bf16.msra.mxu0 0
  %708 = vmatprep.subr.bf16.mxu0 0
  %709 = vmatpush1.bf16.msra.mxu0 0
  %710 = vmatprep.subr.bf16.mxu0 0
  %711 = vmatpush1.bf16.msra.mxu0 0
  %712 = vmatprep.subr.bf16.mxu0 0
  %713 = vmatpush1.bf16.msra.mxu0 0
  %714 = vmatprep.subr.bf16.mxu0 0
  %715 = vmatpush1.bf16.msra.mxu0 0
  %716 = vmatprep.subr.bf16.mxu0 0
  %717 = vmatpush1.bf16.msra.mxu0 0
  %718 = vmatprep.subr.bf16.mxu0 0
  %719 = vmatpush1.bf16.msra.mxu0 0
  %720 = vmatprep.mubr.bf16.mxu0 0
  %721 = vmatmul.mubr.bf16.gmra.mrb[0].mxu0 %v622
  %v722 = vpop.f32.mrb[0].mxu0
  %v723 = vadd.f32 0.0, %v722
  %v724 = vpop.f32.mrb[0].mxu0
  %v725 = vpop.f32.mrb[0].mxu0
  %v726 = vadd.f32 0.0, %v725
  %v727 = vpop.f32.mrb[0].mxu0
  %728 = vdwg.mxu0
  %v729 = vadd.f32 %v616, %v723
  %v730 = vadd.f32 %v619, %v726
  %v731 = vld [vmem:[%s4] sm:$0x1]
  %v733 = vlaneseq
  %v734 = vshrl.u32 %v733, 7
  %v735 = vsub.s32 0, %v734
  %v736 = vrot.slane %v731, %v735
  %v738 = vadd.f32 %v729, %v736
  %v739 = vadd.f32 %v730, %v736
  %v740 = vsub.f32 %v33, %v738
  %v741 = vsub.f32 %v34, %v739
  %v742 = vrot.slane %v740, 7
  %v743 = vrot.slane %v741, 7
  %v744 = vsel %vm52, %v742, %v743
  %v745 = vsel %vm52, %v743, %v742
  %v746 = vmul.f32 %v745, %v42
  %v747 = vmul.f32 %v744, %v43
  %v748 = vrot.slane %v740, 1
  %v749 = vrot.slane %v741, 1
  %v750 = vsel %vm59, %v748, %v749
  %v751 = vsel %vm59, %v749, %v748
  %v752 = vmul.f32 %v750, %v48
  %v753 = vmul.f32 %v751, %v49
  %v754 = vpack.c.bf16 %v747, %v746
  %v755 = vld [vmem:[%s5] sm:$0xff]
  %v756 = vld [vmem:[%s5 + $0x8] sm:$0xff]
  %v757 = vld [vmem:[%s5 + $0x10] sm:$0xff]
  %v758 = vld [vmem:[%s5 + $0x18] sm:$0xff]
  %v759 = vld [vmem:[%s5 + $0x20] sm:$0xff]
  %v760 = vld [vmem:[%s5 + $0x28] sm:$0xff]
  %v761 = vld [vmem:[%s5 + $0x30] sm:$0xff]
  %v762 = vld [vmem:[%s5 + $0x38] sm:$0xff]
  %v763 = vld [vmem:[%s5 + $0x40] sm:$0xff]
  %v764 = vld [vmem:[%s5 + $0x48] sm:$0xff]
  %v765 = vld [vmem:[%s5 + $0x50] sm:$0xff]
  %v766 = vld [vmem:[%s5 + $0x58] sm:$0xff]
  %v767 = vld [vmem:[%s5 + $0x60] sm:$0xff]
  %v768 = vld [vmem:[%s5 + $0x68] sm:$0xff]
  %v769 = vld [vmem:[%s5 + $0x70] sm:$0xff]
  %v770 = vld [vmem:[%s5 + $0x78] sm:$0xff]
  %v771 = vpack.c.bf16 %v741, %v740
  %s772 = scalar_lea.vmem %s5, 128
  %v773 = vld [vmem:[%s772] sm:$0xff]
  %v774 = vld [vmem:[%s772 + $0x8] sm:$0xff]
  %v775 = vld [vmem:[%s772 + $0x10] sm:$0xff]
  %v776 = vld [vmem:[%s772 + $0x18] sm:$0xff]
  %v777 = vld [vmem:[%s772 + $0x20] sm:$0xff]
  %v778 = vld [vmem:[%s772 + $0x28] sm:$0xff]
  %v779 = vld [vmem:[%s772 + $0x30] sm:$0xff]
  %v780 = vld [vmem:[%s772 + $0x38] sm:$0xff]
  %v781 = vld [vmem:[%s772 + $0x40] sm:$0xff]
  %v782 = vld [vmem:[%s772 + $0x48] sm:$0xff]
  %v783 = vld [vmem:[%s772 + $0x50] sm:$0xff]
  %v784 = vld [vmem:[%s772 + $0x58] sm:$0xff]
  %v785 = vld [vmem:[%s772 + $0x60] sm:$0xff]
  %v786 = vld [vmem:[%s772 + $0x68] sm:$0xff]
  %v787 = vld [vmem:[%s772 + $0x70] sm:$0xff]
  %v788 = vld [vmem:[%s772 + $0x78] sm:$0xff]
  %v805 = vunpack.c.l.b16 %v773
  %v806 = vunpack.c.h.b16 %v773
  %v807 = vunpack.c.l.b16 %v774
  %v808 = vunpack.c.h.b16 %v774
  %v809 = vunpack.c.l.b16 %v775
  %v810 = vunpack.c.h.b16 %v775
  %v811 = vunpack.c.l.b16 %v776
  %v812 = vunpack.c.h.b16 %v776
  %v813 = vunpack.c.l.b16 %v777
  %v814 = vunpack.c.h.b16 %v777
  %v815 = vunpack.c.l.b16 %v778
  %v816 = vunpack.c.h.b16 %v778
  %v817 = vunpack.c.l.b16 %v779
  %v818 = vunpack.c.h.b16 %v779
  %v819 = vunpack.c.l.b16 %v780
  %v820 = vunpack.c.h.b16 %v780
  %v821 = vunpack.c.l.b16 %v781
  %v822 = vunpack.c.h.b16 %v781
  %v823 = vunpack.c.l.b16 %v782
  %v824 = vunpack.c.h.b16 %v782
  %v825 = vunpack.c.l.b16 %v783
  %v826 = vunpack.c.h.b16 %v783
  %v827 = vunpack.c.l.b16 %v784
  %v828 = vunpack.c.h.b16 %v784
  %v829 = vunpack.c.l.b16 %v785
  %v830 = vunpack.c.h.b16 %v785
  %v831 = vunpack.c.l.b16 %v786
  %v832 = vunpack.c.h.b16 %v786
  %v833 = vunpack.c.l.b16 %v787
  %v834 = vunpack.c.h.b16 %v787
  %v835 = vunpack.c.l.b16 %v788
  %v836 = vunpack.c.h.b16 %v788
  %v837 = vpack.c.b16 %v807, %v805
  %v838 = vpack.c.b16 %v808, %v806
  %v839 = vpack.c.b16 %v811, %v809
  %v840 = vpack.c.b16 %v812, %v810
  %v841 = vpack.c.b16 %v815, %v813
  %v842 = vpack.c.b16 %v816, %v814
  %v843 = vpack.c.b16 %v819, %v817
  %v844 = vpack.c.b16 %v820, %v818
  %v845 = vpack.c.b16 %v823, %v821
  %v846 = vpack.c.b16 %v824, %v822
  %v847 = vpack.c.b16 %v827, %v825
  %v848 = vpack.c.b16 %v828, %v826
  %v849 = vpack.c.b16 %v831, %v829
  %v850 = vpack.c.b16 %v832, %v830
  %v851 = vpack.c.b16 %v835, %v833
  %v852 = vpack.c.b16 %v836, %v834
  %869 = vmatprep.subr.bf16.mxu0 %v838
  %870 = vmatpush1.bf16.msra.mxu0 %v837
  %871 = vmatprep.subr.bf16.mxu0 %v840
  %872 = vmatpush1.bf16.msra.mxu0 %v839
  %873 = vmatprep.subr.bf16.mxu0 %v842
  %874 = vmatpush1.bf16.msra.mxu0 %v841
  %875 = vmatprep.subr.bf16.mxu0 %v844
  %876 = vmatpush1.bf16.msra.mxu0 %v843
  %877 = vmatprep.subr.bf16.mxu0 %v846
  %878 = vmatpush1.bf16.msra.mxu0 %v845
  %879 = vmatprep.subr.bf16.mxu0 %v848
  %880 = vmatpush1.bf16.msra.mxu0 %v847
  %881 = vmatprep.subr.bf16.mxu0 %v850
  %882 = vmatpush1.bf16.msra.mxu0 %v849
  %883 = vmatprep.subr.bf16.mxu0 %v852
  %884 = vmatpush1.bf16.msra.mxu0 %v851
  %885 = vmatprep.subr.bf16.mxu0 0
  %886 = vmatpush1.bf16.msra.mxu0 0
  %887 = vmatprep.subr.bf16.mxu0 0
  %888 = vmatpush1.bf16.msra.mxu0 0
  %889 = vmatprep.subr.bf16.mxu0 0
  %890 = vmatpush1.bf16.msra.mxu0 0
  %891 = vmatprep.subr.bf16.mxu0 0
  %892 = vmatpush1.bf16.msra.mxu0 0
  %893 = vmatprep.subr.bf16.mxu0 0
  %894 = vmatpush1.bf16.msra.mxu0 0
  %895 = vmatprep.subr.bf16.mxu0 0
  %896 = vmatpush1.bf16.msra.mxu0 0
  %897 = vmatprep.subr.bf16.mxu0 0
  %898 = vmatpush1.bf16.msra.mxu0 0
  %899 = vmatprep.subr.bf16.mxu0 0
  %900 = vmatpush1.bf16.msra.mxu0 0
  %901 = vmatprep.mubr.bf16.mxu0 0
  %902 = vmatmul.mubr.bf16.gmra.mrb[0].mxu0 %v771
  %v903 = vpop.f32.mrb[0].mxu0
  %v904 = vadd.f32 0.0, %v903
  %v905 = vpop.f32.mrb[0].mxu0
  %v906 = vadd.f32 0.0, %v905
  %v907 = vpop.f32.mrb[0].mxu0
  %v908 = vadd.f32 0.0, %v907
  %v909 = vpop.f32.mrb[0].mxu0
  %v910 = vadd.f32 0.0, %v909
  %911 = vdwg.mxu0
  %v928 = vunpack.c.l.b16 %v755
  %v929 = vunpack.c.h.b16 %v755
  %v930 = vunpack.c.l.b16 %v756
  %v931 = vunpack.c.h.b16 %v756
  %v932 = vunpack.c.l.b16 %v757
  %v933 = vunpack.c.h.b16 %v757
  %v934 = vunpack.c.l.b16 %v758
  %v935 = vunpack.c.h.b16 %v758
  %v936 = vunpack.c.l.b16 %v759
  %v937 = vunpack.c.h.b16 %v759
  %v938 = vunpack.c.l.b16 %v760
  %v939 = vunpack.c.h.b16 %v760
  %v940 = vunpack.c.l.b16 %v761
  %v941 = vunpack.c.h.b16 %v761
  %v942 = vunpack.c.l.b16 %v762
  %v943 = vunpack.c.h.b16 %v762
  %v944 = vunpack.c.l.b16 %v763
  %v945 = vunpack.c.h.b16 %v763
  %v946 = vunpack.c.l.b16 %v764
  %v947 = vunpack.c.h.b16 %v764
  %v948 = vunpack.c.l.b16 %v765
  %v949 = vunpack.c.h.b16 %v765
  %v950 = vunpack.c.l.b16 %v766
  %v951 = vunpack.c.h.b16 %v766
  %v952 = vunpack.c.l.b16 %v767
  %v953 = vunpack.c.h.b16 %v767
  %v954 = vunpack.c.l.b16 %v768
  %v955 = vunpack.c.h.b16 %v768
  %v956 = vunpack.c.l.b16 %v769
  %v957 = vunpack.c.h.b16 %v769
  %v958 = vunpack.c.l.b16 %v770
  %v959 = vunpack.c.h.b16 %v770
  %v960 = vpack.c.b16 %v930, %v928
  %v961 = vpack.c.b16 %v931, %v929
  %v962 = vpack.c.b16 %v934, %v932
  %v963 = vpack.c.b16 %v935, %v933
  %v964 = vpack.c.b16 %v938, %v936
  %v965 = vpack.c.b16 %v939, %v937
  %v966 = vpack.c.b16 %v942, %v940
  %v967 = vpack.c.b16 %v943, %v941
  %v968 = vpack.c.b16 %v946, %v944
  %v969 = vpack.c.b16 %v947, %v945
  %v970 = vpack.c.b16 %v950, %v948
  %v971 = vpack.c.b16 %v951, %v949
  %v972 = vpack.c.b16 %v954, %v952
  %v973 = vpack.c.b16 %v955, %v953
  %v974 = vpack.c.b16 %v958, %v956
  %v975 = vpack.c.b16 %v959, %v957
  %992 = vmatprep.subr.bf16.mxu0 %v961
  %993 = vmatpush1.bf16.msra.mxu0 %v960
  %994 = vmatprep.subr.bf16.mxu0 %v963
  %995 = vmatpush1.bf16.msra.mxu0 %v962
  %996 = vmatprep.subr.bf16.mxu0 %v965
  %997 = vmatpush1.bf16.msra.mxu0 %v964
  %998 = vmatprep.subr.bf16.mxu0 %v967
  %999 = vmatpush1.bf16.msra.mxu0 %v966
  %1000 = vmatprep.subr.bf16.mxu0 %v969
  %1001 = vmatpush1.bf16.msra.mxu0 %v968
  %1002 = vmatprep.subr.bf16.mxu0 %v971
  %1003 = vmatpush1.bf16.msra.mxu0 %v970
  %1004 = vmatprep.subr.bf16.mxu0 %v973
  %1005 = vmatpush1.bf16.msra.mxu0 %v972
  %1006 = vmatprep.subr.bf16.mxu0 %v975
  %1007 = vmatpush1.bf16.msra.mxu0 %v974
  %1008 = vmatprep.subr.bf16.mxu0 0
  %1009 = vmatpush1.bf16.msra.mxu0 0
  %1010 = vmatprep.subr.bf16.mxu0 0
  %1011 = vmatpush1.bf16.msra.mxu0 0
  %1012 = vmatprep.subr.bf16.mxu0 0
  %1013 = vmatpush1.bf16.msra.mxu0 0
  %1014 = vmatprep.subr.bf16.mxu0 0
  %1015 = vmatpush1.bf16.msra.mxu0 0
  %1016 = vmatprep.subr.bf16.mxu0 0
  %1017 = vmatpush1.bf16.msra.mxu0 0
  %1018 = vmatprep.subr.bf16.mxu0 0
  %1019 = vmatpush1.bf16.msra.mxu0 0
  %1020 = vmatprep.subr.bf16.mxu0 0
  %1021 = vmatpush1.bf16.msra.mxu0 0
  %1022 = vmatprep.subr.bf16.mxu0 0
  %1023 = vmatpush1.bf16.msra.mxu0 0
  %1024 = vmatprep.mubr.bf16.mxu0 0
  %1025 = vmatmul.mubr.bf16.gmra.mrb[0].mxu0 %v754
  %v1026 = vpop.f32.mrb[0].mxu0
  %v1027 = vadd.f32 %v904, %v1026
  %v1028 = vpop.f32.mrb[0].mxu0
  %v1029 = vadd.f32 %v906, %v1028
  %v1030 = vpop.f32.mrb[0].mxu0
  %v1031 = vadd.f32 %v908, %v1030
  %v1032 = vpop.f32.mrb[0].mxu0
  %v1033 = vadd.f32 %v910, %v1032
  %1034 = vdwg.mxu0
  %v1035 = vpack.c.bf16 %v753, %v752
  %s1036 = scalar_lea.vmem %s5, 256
  %v1037 = vld [vmem:[%s1036] sm:$0xff]
  %v1038 = vld [vmem:[%s1036 + $0x8] sm:$0xff]
  %v1039 = vld [vmem:[%s1036 + $0x10] sm:$0xff]
  %v1040 = vld [vmem:[%s1036 + $0x18] sm:$0xff]
  %v1041 = vld [vmem:[%s1036 + $0x20] sm:$0xff]
  %v1042 = vld [vmem:[%s1036 + $0x28] sm:$0xff]
  %v1043 = vld [vmem:[%s1036 + $0x30] sm:$0xff]
  %v1044 = vld [vmem:[%s1036 + $0x38] sm:$0xff]
  %v1045 = vld [vmem:[%s1036 + $0x40] sm:$0xff]
  %v1046 = vld [vmem:[%s1036 + $0x48] sm:$0xff]
  %v1047 = vld [vmem:[%s1036 + $0x50] sm:$0xff]
  %v1048 = vld [vmem:[%s1036 + $0x58] sm:$0xff]
  %v1049 = vld [vmem:[%s1036 + $0x60] sm:$0xff]
  %v1050 = vld [vmem:[%s1036 + $0x68] sm:$0xff]
  %v1051 = vld [vmem:[%s1036 + $0x70] sm:$0xff]
  %v1052 = vld [vmem:[%s1036 + $0x78] sm:$0xff]
  %v1069 = vunpack.c.l.b16 %v1037
  %v1070 = vunpack.c.h.b16 %v1037
  %v1071 = vunpack.c.l.b16 %v1038
  %v1072 = vunpack.c.h.b16 %v1038
  %v1073 = vunpack.c.l.b16 %v1039
  %v1074 = vunpack.c.h.b16 %v1039
  %v1075 = vunpack.c.l.b16 %v1040
  %v1076 = vunpack.c.h.b16 %v1040
  %v1077 = vunpack.c.l.b16 %v1041
  %v1078 = vunpack.c.h.b16 %v1041
  %v1079 = vunpack.c.l.b16 %v1042
  %v1080 = vunpack.c.h.b16 %v1042
  %v1081 = vunpack.c.l.b16 %v1043
  %v1082 = vunpack.c.h.b16 %v1043
  %v1083 = vunpack.c.l.b16 %v1044
  %v1084 = vunpack.c.h.b16 %v1044
  %v1085 = vunpack.c.l.b16 %v1045
  %v1086 = vunpack.c.h.b16 %v1045
  %v1087 = vunpack.c.l.b16 %v1046
  %v1088 = vunpack.c.h.b16 %v1046
  %v1089 = vunpack.c.l.b16 %v1047
  %v1090 = vunpack.c.h.b16 %v1047
  %v1091 = vunpack.c.l.b16 %v1048
  %v1092 = vunpack.c.h.b16 %v1048
  %v1093 = vunpack.c.l.b16 %v1049
  %v1094 = vunpack.c.h.b16 %v1049
  %v1095 = vunpack.c.l.b16 %v1050
  %v1096 = vunpack.c.h.b16 %v1050
  %v1097 = vunpack.c.l.b16 %v1051
  %v1098 = vunpack.c.h.b16 %v1051
  %v1099 = vunpack.c.l.b16 %v1052
  %v1100 = vunpack.c.h.b16 %v1052
  %v1101 = vpack.c.b16 %v1071, %v1069
  %v1102 = vpack.c.b16 %v1072, %v1070
  %v1103 = vpack.c.b16 %v1075, %v1073
  %v1104 = vpack.c.b16 %v1076, %v1074
  %v1105 = vpack.c.b16 %v1079, %v1077
  %v1106 = vpack.c.b16 %v1080, %v1078
  %v1107 = vpack.c.b16 %v1083, %v1081
  %v1108 = vpack.c.b16 %v1084, %v1082
  %v1109 = vpack.c.b16 %v1087, %v1085
  %v1110 = vpack.c.b16 %v1088, %v1086
  %v1111 = vpack.c.b16 %v1091, %v1089
  %v1112 = vpack.c.b16 %v1092, %v1090
  %v1113 = vpack.c.b16 %v1095, %v1093
  %v1114 = vpack.c.b16 %v1096, %v1094
  %v1115 = vpack.c.b16 %v1099, %v1097
  %v1116 = vpack.c.b16 %v1100, %v1098
  %1133 = vmatprep.subr.bf16.mxu0 %v1102
  %1134 = vmatpush1.bf16.msra.mxu0 %v1101
  %1135 = vmatprep.subr.bf16.mxu0 %v1104
  %1136 = vmatpush1.bf16.msra.mxu0 %v1103
  %1137 = vmatprep.subr.bf16.mxu0 %v1106
  %1138 = vmatpush1.bf16.msra.mxu0 %v1105
  %1139 = vmatprep.subr.bf16.mxu0 %v1108
  %1140 = vmatpush1.bf16.msra.mxu0 %v1107
  %1141 = vmatprep.subr.bf16.mxu0 %v1110
  %1142 = vmatpush1.bf16.msra.mxu0 %v1109
  %1143 = vmatprep.subr.bf16.mxu0 %v1112
  %1144 = vmatpush1.bf16.msra.mxu0 %v1111
  %1145 = vmatprep.subr.bf16.mxu0 %v1114
  %1146 = vmatpush1.bf16.msra.mxu0 %v1113
  %1147 = vmatprep.subr.bf16.mxu0 %v1116
  %1148 = vmatpush1.bf16.msra.mxu0 %v1115
  %1149 = vmatprep.subr.bf16.mxu0 0
  %1150 = vmatpush1.bf16.msra.mxu0 0
  %1151 = vmatprep.subr.bf16.mxu0 0
  %1152 = vmatpush1.bf16.msra.mxu0 0
  %1153 = vmatprep.subr.bf16.mxu0 0
  %1154 = vmatpush1.bf16.msra.mxu0 0
  %1155 = vmatprep.subr.bf16.mxu0 0
  %1156 = vmatpush1.bf16.msra.mxu0 0
  %1157 = vmatprep.subr.bf16.mxu0 0
  %1158 = vmatpush1.bf16.msra.mxu0 0
  %1159 = vmatprep.subr.bf16.mxu0 0
  %1160 = vmatpush1.bf16.msra.mxu0 0
  %1161 = vmatprep.subr.bf16.mxu0 0
  %1162 = vmatpush1.bf16.msra.mxu0 0
  %1163 = vmatprep.subr.bf16.mxu0 0
  %1164 = vmatpush1.bf16.msra.mxu0 0
  %1165 = vmatprep.mubr.bf16.mxu0 0
  %1166 = vmatmul.mubr.bf16.gmra.mrb[0].mxu0 %v1035
  %v1167 = vpop.f32.mrb[0].mxu0
  %v1168 = vadd.f32 0.0, %v1167
  %v1169 = vpop.f32.mrb[0].mxu0
  %v1170 = vadd.f32 0.0, %v1169
  %v1171 = vpop.f32.mrb[0].mxu0
  %v1172 = vadd.f32 0.0, %v1171
  %v1173 = vpop.f32.mrb[0].mxu0
  %v1174 = vadd.f32 0.0, %v1173
  %1175 = vdwg.mxu0
  %v1176 = vadd.f32 %v1027, %v1168
  %v1177 = vadd.f32 %v1029, %v1170
  %v1178 = vadd.f32 %v1031, %v1172
  %v1179 = vadd.f32 %v1033, %v1174
  %v1180 = vld [vmem:[%s6] sm:$0x3]
  %v1182 = vlaneseq
  %v1183 = vshrl.u32 %v1182, 7
  %v1184 = vsub.s32 0, %v1183
  %v1185 = vrot.slane %v1180, %v1184
  %v1186 = vlaneseq
  %v1187 = vshrl.u32 %v1186, 7
  %v1188 = vsub.s32 1, %v1187
  %v1189 = vrot.slane %v1180, %v1188
  %v1192 = vadd.f32 %v1176, %v1185
  %v1193 = vadd.f32 %v1177, %v1189
  %v1194 = vadd.f32 %v1178, %v1185
  %v1195 = vadd.f32 %v1179, %v1189
  %v1196 = vmax.f32 %v1192, 0.0
  %v1197 = vmax.f32 %v1193, 0.0
  %v1198 = vmax.f32 %v1194, 0.0
  %v1199 = vmax.f32 %v1195, 0.0
  %v1200 = vadd.f32 %v1196, %v1198
  %v1201 = vrot.slane %v1200, 4
  %v1202 = vadd.f32 %v1200, %v1201
  %v1203 = vrot.slane %v1202, 2
  %v1204 = vadd.f32 %v1202, %v1203
  %v1205 = vrot.slane %v1204, 1
  %v1206 = vadd.f32 %v1204, %v1205
  %v1207 = vadd.f32 %v1197, %v1199
  %v1208 = vrot.slane %v1207, 4
  %v1209 = vadd.f32 %v1207, %v1208
  %v1210 = vrot.slane %v1209, 2
  %v1211 = vadd.f32 %v1209, %v1210
  %v1212 = vrot.slane %v1211, 1
  %v1213 = vadd.f32 %v1211, %v1212
  %v1214 = vpack.c.bf16 %v1206, %v1206
  %v1215 = vpack.c.bf16 %v1213, %v1213
  %v1216 = vld [vmem:[%s7] sm:$0xf]
  %v1217 = vld [vmem:[%s7 + $0x4] sm:$0xf]
  %v1218 = vld [vmem:[%s7 + $0x8] sm:$0xf]
  %v1219 = vld [vmem:[%s7 + $0xc] sm:$0xf]
  %v1220 = vld [vmem:[%s7 + $0x10] sm:$0xf]
  %v1221 = vld [vmem:[%s7 + $0x14] sm:$0xf]
  %v1222 = vld [vmem:[%s7 + $0x18] sm:$0xf]
  %v1223 = vld [vmem:[%s7 + $0x1c] sm:$0xf]
  %v1224 = vld [vmem:[%s7 + $0x20] sm:$0xf]
  %v1225 = vld [vmem:[%s7 + $0x24] sm:$0xf]
  %v1226 = vld [vmem:[%s7 + $0x28] sm:$0xf]
  %v1227 = vld [vmem:[%s7 + $0x2c] sm:$0xf]
  %v1228 = vld [vmem:[%s7 + $0x30] sm:$0xf]
  %v1229 = vld [vmem:[%s7 + $0x34] sm:$0xf]
  %v1230 = vld [vmem:[%s7 + $0x38] sm:$0xf]
  %v1231 = vld [vmem:[%s7 + $0x3c] sm:$0xf]
  %v1232 = vld [vmem:[%s7 + $0x40] sm:$0xf]
  %v1233 = vld [vmem:[%s7 + $0x44] sm:$0xf]
  %v1234 = vld [vmem:[%s7 + $0x48] sm:$0xf]
  %v1235 = vld [vmem:[%s7 + $0x4c] sm:$0xf]
  %v1236 = vld [vmem:[%s7 + $0x50] sm:$0xf]
  %v1237 = vld [vmem:[%s7 + $0x54] sm:$0xf]
  %v1238 = vld [vmem:[%s7 + $0x58] sm:$0xf]
  %v1239 = vld [vmem:[%s7 + $0x5c] sm:$0xf]
  %v1240 = vld [vmem:[%s7 + $0x60] sm:$0xf]
  %v1241 = vld [vmem:[%s7 + $0x64] sm:$0xf]
  %v1242 = vld [vmem:[%s7 + $0x68] sm:$0xf]
  %v1243 = vld [vmem:[%s7 + $0x6c] sm:$0xf]
  %v1244 = vld [vmem:[%s7 + $0x70] sm:$0xf]
  %v1245 = vld [vmem:[%s7 + $0x74] sm:$0xf]
  %v1246 = vld [vmem:[%s7 + $0x78] sm:$0xf]
  %v1247 = vld [vmem:[%s7 + $0x7c] sm:$0xf]
  %v1248 = vld [vmem:[%s8] sm:$0x1]
  %v1281 = vunpack.c.l.b16 %v1216
  %v1282 = vunpack.c.l.b16 %v1217
  %v1283 = vunpack.c.l.b16 %v1218
  %v1284 = vunpack.c.l.b16 %v1219
  %v1285 = vunpack.c.l.b16 %v1220
  %v1286 = vunpack.c.l.b16 %v1221
  %v1287 = vunpack.c.l.b16 %v1222
  %v1288 = vunpack.c.l.b16 %v1223
  %v1289 = vunpack.c.l.b16 %v1224
  %v1290 = vunpack.c.l.b16 %v1225
  %v1291 = vunpack.c.l.b16 %v1226
  %v1292 = vunpack.c.l.b16 %v1227
  %v1293 = vunpack.c.l.b16 %v1228
  %v1294 = vunpack.c.l.b16 %v1229
  %v1295 = vunpack.c.l.b16 %v1230
  %v1296 = vunpack.c.l.b16 %v1231
  %v1297 = vunpack.c.l.b16 %v1232
  %v1298 = vunpack.c.l.b16 %v1233
  %v1299 = vunpack.c.l.b16 %v1234
  %v1300 = vunpack.c.l.b16 %v1235
  %v1301 = vunpack.c.l.b16 %v1236
  %v1302 = vunpack.c.l.b16 %v1237
  %v1303 = vunpack.c.l.b16 %v1238
  %v1304 = vunpack.c.l.b16 %v1239
  %v1305 = vunpack.c.l.b16 %v1240
  %v1306 = vunpack.c.l.b16 %v1241
  %v1307 = vunpack.c.l.b16 %v1242
  %v1308 = vunpack.c.l.b16 %v1243
  %v1309 = vunpack.c.l.b16 %v1244
  %v1310 = vunpack.c.l.b16 %v1245
  %v1311 = vunpack.c.l.b16 %v1246
  %v1312 = vunpack.c.l.b16 %v1247
  %v1313 = vpack.c.b16 %v1282, %v1281
  %v1314 = vpack.c.b16 %v1284, %v1283
  %v1315 = vpack.c.b16 %v1286, %v1285
  %v1316 = vpack.c.b16 %v1288, %v1287
  %v1317 = vpack.c.b16 %v1290, %v1289
  %v1318 = vpack.c.b16 %v1292, %v1291
  %v1319 = vpack.c.b16 %v1294, %v1293
  %v1320 = vpack.c.b16 %v1296, %v1295
  %v1321 = vpack.c.b16 %v1298, %v1297
  %v1322 = vpack.c.b16 %v1300, %v1299
  %v1323 = vpack.c.b16 %v1302, %v1301
  %v1324 = vpack.c.b16 %v1304, %v1303
  %v1325 = vpack.c.b16 %v1306, %v1305
  %v1326 = vpack.c.b16 %v1308, %v1307
  %v1327 = vpack.c.b16 %v1310, %v1309
  %v1328 = vpack.c.b16 %v1312, %v1311
  %1345 = vmatprep.subr.bf16.mxu0 0
  %1346 = vmatpush1.bf16.msra.mxu0 %v1313
  %1347 = vmatprep.subr.bf16.mxu0 0
  %1348 = vmatpush1.bf16.msra.mxu0 %v1314
  %1349 = vmatprep.subr.bf16.mxu0 0
  %1350 = vmatpush1.bf16.msra.mxu0 %v1315
  %1351 = vmatprep.subr.bf16.mxu0 0
  %1352 = vmatpush1.bf16.msra.mxu0 %v1316
  %1353 = vmatprep.subr.bf16.mxu0 0
  %1354 = vmatpush1.bf16.msra.mxu0 %v1317
  %1355 = vmatprep.subr.bf16.mxu0 0
  %1356 = vmatpush1.bf16.msra.mxu0 %v1318
  %1357 = vmatprep.subr.bf16.mxu0 0
  %1358 = vmatpush1.bf16.msra.mxu0 %v1319
  %1359 = vmatprep.subr.bf16.mxu0 0
  %1360 = vmatpush1.bf16.msra.mxu0 %v1320
  %1361 = vmatprep.subr.bf16.mxu0 0
  %1362 = vmatpush1.bf16.msra.mxu0 %v1321
  %1363 = vmatprep.subr.bf16.mxu0 0
  %1364 = vmatpush1.bf16.msra.mxu0 %v1322
  %1365 = vmatprep.subr.bf16.mxu0 0
  %1366 = vmatpush1.bf16.msra.mxu0 %v1323
  %1367 = vmatprep.subr.bf16.mxu0 0
  %1368 = vmatpush1.bf16.msra.mxu0 %v1324
  %1369 = vmatprep.subr.bf16.mxu0 0
  %1370 = vmatpush1.bf16.msra.mxu0 %v1325
  %1371 = vmatprep.subr.bf16.mxu0 0
  %1372 = vmatpush1.bf16.msra.mxu0 %v1326
  %1373 = vmatprep.subr.bf16.mxu0 0
  %1374 = vmatpush1.bf16.msra.mxu0 %v1327
  %1375 = vmatprep.subr.bf16.mxu0 0
  %1376 = vmatpush1.bf16.msra.mxu0 %v1328
  %1377 = vmatprep.mubr.bf16.mxu0 %v1215
  %1378 = vmatmul.mubr.bf16.gmra.mrb[0].mxu0 %v1214
  %v1379 = vpop.f32.mrb[0].mxu0
  %v1380 = vadd.f32 %v1248, %v1379
  %v1381 = vpop.f32.mrb[0].mxu0
  %v1382 = vpop.f32.mrb[0].mxu0
  %v1383 = vpop.f32.mrb[0].mxu0
  %1384 = vdwg.mxu0
  %1385 = vst [vmem:[%s9] sm:$0x1] %v1380
  // Predicated region
  $region38: #{forward.1} parent=0 // pred_check
    _
  $region39: #{forward.1} parent=0 // pred_check_branch
    %1387 = sbr.rel (0) target = $region41
  $region40: #{forward.1} parent=0 // pred_region
    _
  $region41: #{forward.1} parent=0 // pred_fallthru
    _
  // Predicated region
  $region42: #{forward.1} parent=0 // pred_check
    _
  $region43: #{forward.1} parent=0 // pred_check_branch
    %1389 = sbr.rel (0) target = $region45
  $region44: #{forward.1} parent=0 // pred_region
    _
  $region45: #{forward.1} parent=0 // pred_fallthru
    _

</llo_original>
